<compile_context>
chip_gen: v6e
topology: v6e:2x2x1
jax: 0.10.0
libtpu: 0.0.40
codegen_flags: <defaults>
</compile_context>

<pallas_src>
import math

import jax
import jax.numpy as jnp
from jax import lax
from jax.experimental import pallas as pl
from jax.experimental.pallas import tpu as pltpu

LN_EPS = 1e-5                     # torch.nn.LayerNorm default
_VMEM_LIMIT = 32 * 1024 * 1024    # safe on v5e (128 MiB), v6e (128), v7x (64)


def _cparams(sem):
    return pltpu.CompilerParams(dimension_semantics=sem,
                                vmem_limit_bytes=_VMEM_LIMIT)


def _largest_divisor(n, cap):
    """Largest divisor of n that is <= cap (>= 1)."""
    for t in range(min(cap, n), 0, -1):
        if n % t == 0:
            return t
    return 1


def _pick_row_tile(m, cap):
    """Row tile for 2D (rows, C) blocks: divides m and is a multiple of 8
    (or equals m), so no partial / misaligned blocks are ever generated."""
    if m <= cap:
        return m
    for t in range(min(cap, m), 0, -1):
        if m % t == 0 and t % 8 == 0:
            return t
    return m


# ------------------------------ kernel math helpers ------------------------------

def _layernorm_f32(x, gamma, beta):
    mu = jnp.mean(x, axis=-1, keepdims=True)
    var = jnp.mean(jnp.square(x - mu), axis=-1, keepdims=True)
    return (x - mu) * lax.rsqrt(var + LN_EPS) * gamma + beta


def _gelu_exact(x):
    # torch.nn.GELU default (erf form)
    return 0.5 * x * (1.0 + lax.erf(x * (1.0 / math.sqrt(2.0))))


# ------------------------------ Pallas kernels ------------------------------

def _fused_layer_kernel(xp_ref, res_ref, dww_ref, dwb_ref, g_ref, be_ref,
                        w1_ref, b1_ref, w2_ref, b2_ref, sc_ref, o_ref, d_scr):
    # xp_ref : (H+6, W+6, C)  zero-padded full image (VMEM resident per n)
    # res_ref: (TH, W, C)     residual rows for this (n, h) tile
    # dww_ref: (49, C)        depthwise taps, row index = kh*7 + kw
    # dwb_ref: (1, C)
    # g/be   : (1, C)         LayerNorm affine
    # w1/b1  : (C, 4C) / (1, 4C)
    # w2/b2  : (4C, C) / (1, C)
    # sc_ref : (1, C)         block_scale
    # o_ref  : (TH, W, C)
    # d_scr  : (TH*W, C) f32  VMEM staging for the depthwise output
    TH, W, C = o_ref.shape
    h0 = pl.program_id(1) * TH

    # Halo'd row window of the resident padded image: rows [h0, h0+TH+6).
    win = xp_ref[pl.ds(h0, TH + 6), :, :].astype(jnp.float32)   # (TH+6, W+6, C)
    dww = dww_ref[...].astype(jnp.float32)                      # (49, C)

    acc = jnp.zeros((TH, W, C), jnp.float32)
    # kw outer: one sublane-shifted copy per kw (7 shifts instead of 49
    # unaligned slices); kh slices are cheap major-axis slices.
    for kw in range(7):
        xw = win[:, kw:kw + W, :]                               # (TH+6, W, C)
        for kh in range(7):
            acc = acc + xw[kh:kh + TH] * dww[kh * 7 + kw]
    acc = acc + dwb_ref[0].astype(jnp.float32)

    # Stage (TH, W, C) -> (TH*W, C) through VMEM scratch (layout change via
    # memory; avoids an in-register reshape across the (8,128) tiling).
    for th in range(TH):
        d_scr[th * W:(th + 1) * W, :] = acc[th]
    d = d_scr[...]                                              # (TH*W, C)

    xn = _layernorm_f32(d, g_ref[...].astype(jnp.float32),
                        be_ref[...].astype(jnp.float32))
    hdn = jnp.dot(xn, w1_ref[...].astype(jnp.float32),
                  preferred_element_type=jnp.float32) + b1_ref[...].astype(jnp.float32)
    hdn = _gelu_exact(hdn)
    y = jnp.dot(hdn, w2_ref[...].astype(jnp.float32),
                preferred_element_type=jnp.float32) + b2_ref[...].astype(jnp.float32)
    sc = sc_ref[...].astype(jnp.float32)                        # (1, C)

    for th in range(TH):
        row = res_ref[th].astype(jnp.float32) + sc * y[th * W:(th + 1) * W, :]
        o_ref[th] = row.astype(o_ref.dtype)


def _layernorm_kernel(x_ref, g_ref, b_ref, o_ref):
    x = x_ref[...].astype(jnp.float32)
    o_ref[...] = _layernorm_f32(
        x, g_ref[...].astype(jnp.float32), b_ref[...].astype(jnp.float32)
    ).astype(o_ref.dtype)


def _matmul_bias_kernel(x_ref, w_ref, b_ref, o_ref):
    y = jnp.dot(x_ref[...].astype(jnp.float32), w_ref[...].astype(jnp.float32),
                preferred_element_type=jnp.float32) + b_ref[...].astype(jnp.float32)
    o_ref[...] = y.astype(o_ref.dtype)


# ------------------------------ kernel wrappers ------------------------------

def convnext_block_layer(x, p, *, rows_per_tile=512):
    """block_scale * (pwconv2(gelu(pwconv1(ln(dwconv7x7(x)))))) + x, fused."""
    N, H, W, C = x.shape
    C4 = 4 * C
    xp = jnp.pad(x, ((0, 0), (3, 3), (3, 3), (0, 0)))           # pad=3 like Conv2d(7)

    th_cap = max(1, rows_per_tile // max(W, 1))
    TH = _largest_divisor(H, th_cap)
    nH = H // TH
    M = N * H * W

    cost = pl.CostEstimate(
        flops=int(M * C * (2 * 49 + 4 * C4)),
        transcendentals=int(M * C4),
        bytes_accessed=int(4 * (N * (H + 6) * (W + 6) * C + 2 * M * C
                                + 2 * C * C4 + C4 + 52 * C)),
    )

    out = pl.pallas_call(
        _fused_layer_kernel,
        out_shape=jax.ShapeDtypeStruct((N, H, W, C), x.dtype),
        grid=(N, nH),
        in_specs=[
            # Full padded image: block index constant along h => stays resident.
            pl.BlockSpec((None, H + 6, W + 6, C), lambda n, h: (n, 0, 0, 0)),
            pl.BlockSpec((None, TH, W, C), lambda n, h: (n, h, 0, 0)),   # residual
            pl.BlockSpec((49, C), lambda n, h: (0, 0)),                  # dw weights
            pl.BlockSpec((1, C), lambda n, h: (0, 0)),                   # dw bias
            pl.BlockSpec((1, C), lambda n, h: (0, 0)),                   # ln gamma
            pl.BlockSpec((1, C), lambda n, h: (0, 0)),                   # ln beta
            pl.BlockSpec((C, C4), lambda n, h: (0, 0)),                  # w1
            pl.BlockSpec((1, C4), lambda n, h: (0, 0)),                  # b1
            pl.BlockSpec((C4, C), lambda n, h: (0, 0)),                  # w2
            pl.BlockSpec((1, C), lambda n, h: (0, 0)),                   # b2
            pl.BlockSpec((1, C), lambda n, h: (0, 0)),                   # block_scale
        ],
        out_specs=pl.BlockSpec((None, TH, W, C), lambda n, h: (n, h, 0, 0)),
        scratch_shapes=[pltpu.VMEM((TH * W, C), jnp.float32)],
        compiler_params=_cparams(("parallel", "parallel")),
        cost_estimate=cost,
    )(xp, x, p["dw_w"], p["dw_b"], p["ln_g"], p["ln_b"],
      p["w1"], p["b1"], p["w2"], p["b2"], p["scale"])
    return out


def layernorm_nhwc(x, g, b, *, rows_per_tile=1024):
    N, H, W, C = x.shape
    M = N * H * W
    x2 = x.reshape(M, C)
    TM = _pick_row_tile(M, rows_per_tile)
    out = pl.pallas_call(
        _layernorm_kernel,
        out_shape=jax.ShapeDtypeStruct((M, C), x.dtype),
        grid=(M // TM,),
        in_specs=[pl.BlockSpec((TM, C), lambda i: (i, 0)),
                  pl.BlockSpec((1, C), lambda i: (0, 0)),
                  pl.BlockSpec((1, C), lambda i: (0, 0))],
        out_specs=pl.BlockSpec((TM, C), lambda i: (i, 0)),
        compiler_params=_cparams(("parallel",)),
    )(x2, g, b)
    return out.reshape(N, H, W, C)


def patchify_conv(x, w, b, k, *, rows_per_tile=1024):
    # Conv2d(kernel=k, stride=k): unfold non-overlapping patches then matmul.
    # w: (k, k, Cin, Cout), b: (1, Cout)
    # TODO(synk): move the patch unfold into the kernel (Element-offset rows) to
    #             avoid materializing the unfolded activation in HBM.
    N, H, W, Cin = x.shape
    Cout = w.shape[-1]
    Ho, Wo = H // k, W // k
    M, K = N * Ho * Wo, k * k * Cin
    xr = (x.reshape(N, Ho, k, Wo, k, Cin)
           .transpose(0, 1, 3, 2, 4, 5)
           .reshape(M, K))
    wm = w.reshape(K, Cout)
    TM = _pick_row_tile(M, rows_per_tile)
    out = pl.pallas_call(
        _matmul_bias_kernel,
        out_shape=jax.ShapeDtypeStruct((M, Cout), x.dtype),
        grid=(M // TM,),
        in_specs=[pl.BlockSpec((TM, K), lambda i: (i, 0)),
                  pl.BlockSpec((K, Cout), lambda i: (0, 0)),
                  pl.BlockSpec((1, Cout), lambda i: (0, 0))],
        out_specs=pl.BlockSpec((TM, Cout), lambda i: (i, 0)),
        compiler_params=_cparams(("parallel",)),
        cost_estimate=pl.CostEstimate(
            flops=int(2 * M * K * Cout),
            transcendentals=0,
            bytes_accessed=int(4 * (M * K + K * Cout + M * Cout))),
    )(xr, wm, b)
    return out.reshape(N, Ho, Wo, Cout)


# ------------------------------ parameter setup ------------------------------

def _trunc_normal(key, shape):
    # matches nn.init.trunc_normal_(std=0.02) (truncated at +-2 std)
    return jax.random.truncated_normal(key, -2.0, 2.0, shape, jnp.float32) * 0.02


def init_params(key, stem_in_channels, block_cfg, stem_use_pconv2x2=False):
    params = {}
    c0 = block_cfg[0][0]
    k_stem = 2 if stem_use_pconv2x2 else 4
    key, sk = jax.random.split(key)
    params["stem"] = {
        "k": k_stem,
        "w": _trunc_normal(sk, (k_stem, k_stem, stem_in_channels, c0)),
        "b": jnp.zeros((1, c0), jnp.float32),
        "ln_g": jnp.ones((1, c0), jnp.float32),
        "ln_b": jnp.zeros((1, c0), jnp.float32),
    }
    blocks = []
    for block_idx, (c, num_layers) in enumerate(block_cfg):
        layers = []
        for _ in range(num_layers):
            key, k1, k2, k3 = jax.random.split(key, 4)
            layers.append({
                "dw_w": _trunc_normal(k1, (49, c)),      # row index = kh*7 + kw
                "dw_b": jnp.zeros((1, c), jnp.float32),
                "ln_g": jnp.ones((1, c), jnp.float32),
                "ln_b": jnp.zeros((1, c), jnp.float32),
                "w1": _trunc_normal(k2, (c, 4 * c)),
                "b1": jnp.zeros((1, 4 * c), jnp.float32),
                "w2": _trunc_normal(k3, (4 * c, c)),
                "b2": jnp.zeros((1, c), jnp.float32),
                "scale": jnp.ones((1, c), jnp.float32) * 1e-6,
            })
        bp = {
            "layers": layers,
            "ln_g": jnp.ones((1, c), jnp.float32),
            "ln_b": jnp.zeros((1, c), jnp.float32),
            "down": None,
        }
        if block_idx + 1 < len(block_cfg):
            c_next = block_cfg[block_idx + 1][0]
            key, kd = jax.random.split(key)
            bp["down"] = {
                "w": _trunc_normal(kd, (2, 2, c, c_next)),
                "b": jnp.zeros((1, c_next), jnp.float32),
            }
        blocks.append(bp)
    params["blocks"] = blocks
    return params


# ------------------------------ forward pass ------------------------------

def convnext_forward(x_nchw, params, *, rows_per_tile=512):
    # eval mode: stochastic depth is identity.
    # TODO(synk): training-mode stochastic-depth bernoulli masking not implemented.
    x = jnp.transpose(x_nchw, (0, 2, 3, 1))  # NCHW -> NHWC
    stem = params["stem"]
    x = patchify_conv(x, stem["w"], stem["b"], stem["k"], rows_per_tile=rows_per_tile)
    x = layernorm_nhwc(x, stem["ln_g"], stem["ln_b"], rows_per_tile=rows_per_tile)
    features = []
    for bp in params["blocks"]:
        for lp in bp["layers"]:
            x = convnext_block_layer(x, lp, rows_per_tile=rows_per_tile)
        x = layernorm_nhwc(x, bp["ln_g"], bp["ln_b"], rows_per_tile=rows_per_tile)
        features.append(jnp.transpose(x, (0, 3, 1, 2)))  # NCHW features like PyTorch
        if bp["down"] is not None:
            x = patchify_conv(x, bp["down"]["w"], bp["down"]["b"], 2,
                              rows_per_tile=rows_per_tile)
    return features


# ------------------------------ pure-JAX reference (for validation) --------------

def _ref_layernorm(x, g, b):
    mu = jnp.mean(x, axis=-1, keepdims=True)
    var = jnp.mean(jnp.square(x - mu), axis=-1, keepdims=True)
    return (x - mu) * lax.rsqrt(var + LN_EPS) * g + b


def _ref_dwconv(x, w49, b):
    C = x.shape[-1]
    w = w49.reshape(7, 7, 1, C)
    y = lax.conv_general_dilated(
        x, w, (1, 1), ((3, 3), (3, 3)),
        dimension_numbers=("NHWC", "HWIO", "NHWC"),
        feature_group_count=C, precision=lax.Precision.HIGHEST)
    return y + b[0]


def _ref_patchify(x, w, b, k):
    y = lax.conv_general_dilated(
        x, w, (k, k), "VALID",
        dimension_numbers=("NHWC", "HWIO", "NHWC"),
        precision=lax.Precision.HIGHEST)
    return y + b[0]


def _ref_block_layer(x, lp):
    N, H, W, C = x.shape
    d = _ref_dwconv(x, lp["dw_w"], lp["dw_b"])
    h = _ref_layernorm(d, lp["ln_g"][0], lp["ln_b"][0]).reshape(N * H * W, C)
    h = jnp.dot(h, lp["w1"], precision=lax.Precision.HIGHEST) + lp["b1"][0]
    h = 0.5 * h * (1.0 + lax.erf(h / math.sqrt(2.0)))
    y = jnp.dot(h, lp["w2"], precision=lax.Precision.HIGHEST) + lp["b2"][0]
    return x + (lp["scale"][0] * y).reshape(N, H, W, C)


def reference_forward(x_nchw, params):
    x = jnp.transpose(x_nchw, (0, 2, 3, 1))
    stem = params["stem"]
    x = _ref_patchify(x, stem["w"], stem["b"], stem["k"])
    x = _ref_layernorm(x, stem["ln_g"][0], stem["ln_b"][0])
    feats = []
    for bp in params["blocks"]:
        for lp in bp["layers"]:
            x = _ref_block_layer(x, lp)
        x = _ref_layernorm(x, bp["ln_g"][0], bp["ln_b"][0])
        feats.append(jnp.transpose(x, (0, 3, 1, 2)))
        if bp["down"] is not None:
            x = _ref_patchify(x, bp["down"]["w"], bp["down"]["b"], 2)
    return feats


# ------------------------------ main ------------------------------

if __name__ == "__main__":
    key = jax.random.PRNGKey(0)
    key, pkey, xkey, ukey = jax.random.split(key, 4)

    # Small ConvNext: stem_in_channels=3, blocks = ((32, 2), (64, 2)), pconv4x4 stem.
    stem_in_channels = 3
    block_cfg = ((32, 2), (64, 2))
    params = init_params(pkey, stem_in_channels, block_cfg, stem_use_pconv2x2=False)

    # Make block_scale O(1) for the numeric check (the spec's 1e-6 init would make
    # the fused-layer contribution invisible); it is a learnable parameter, so this
    # does not change forward-pass semantics.
    for bp in params["blocks"]:
        for lp in bp["layers"]:
            lp["scale"] = jnp.ones_like(lp["scale"])

    # --- unit check: fused layer kernel vs XLA reference (exercises multi-tile grid) ---
    xu = jax.random.normal(ukey, (2, 8, 4, 32), jnp.float32)     # NHWC
    lp0 = params["blocks"][0]["layers"][0]
    got = convnext_block_layer(xu, lp0, rows_per_tile=8)         # grid = (2, 4)
    want = _ref_block_layer(xu, lp0)
    jax.block_until_ready(got)
    err = float(jnp.max(jnp.abs(got - want)))
    assert err < 2e-3, f"fused layer mismatch: {err}"

    # --- full forward (NCHW in, NCHW features out, like the PyTorch module) ---
    x = jax.random.normal(xkey, (2, 3, 16, 16), jnp.float32)
    fwd = jax.jit(lambda xx: convnext_forward(xx, params, rows_per_tile=8))
    features = fwd(x)
    for f in features:
        jax.block_until_ready(f)

    assert features[0].shape == (2, 32, 4, 4), features[0].shape
    assert features[1].shape == (2, 64, 2, 2), features[1].shape

    ref_features = reference_forward(x, params)
    for f, r in zip(features, ref_features):
        e2e = float(jnp.max(jnp.abs(f - r)))
        assert e2e < 5e-2, f"forward mismatch: {e2e}"

    print("KERNEL_OK")
</pallas_src>

<mosaic_0001>
module attributes {stable_mosaic.version = 11 : i64} {
  func.func @_fused_layer_kernel(%arg0: i32, %arg1: i32, %arg2: memref<1x14x10x32xf32, #tpu.memory_space<vmem>>, %arg3: memref<1x2x4x32xf32, #tpu.memory_space<vmem>>, %arg4: memref<49x32xf32, #tpu.memory_space<vmem>>, %arg5: memref<1x32xf32, #tpu.memory_space<vmem>>, %arg6: memref<1x32xf32, #tpu.memory_space<vmem>>, %arg7: memref<1x32xf32, #tpu.memory_space<vmem>>, %arg8: memref<32x128xf32, #tpu.memory_space<vmem>>, %arg9: memref<1x128xf32, #tpu.memory_space<vmem>>, %arg10: memref<128x32xf32, #tpu.memory_space<vmem>>, %arg11: memref<1x32xf32, #tpu.memory_space<vmem>>, %arg12: memref<1x32xf32, #tpu.memory_space<vmem>>, %arg13: memref<1x2x4x32xf32, #tpu.memory_space<vmem>>, %arg14: memref<8x32xf32, #tpu.memory_space<vmem>>) attributes {dimension_semantics = [#tpu.dimension_semantics<parallel>, #tpu.dimension_semantics<parallel>], iteration_bounds = array<i64: 2, 4>, scalar_prefetch = 0 : i64, scratch_operands = 1 : i64, tpu.core_type = #tpu.core_type<tc>, window_params = [{transform_indices = @transform_0, window_bounds = array<i64: 1, 14, 10, 32>}, {transform_indices = @transform_1, window_bounds = array<i64: 1, 2, 4, 32>}, {pipeline_mode = #tpu.pipeline_mode<synchronous>, transform_indices = @transform_2, window_bounds = array<i64: 49, 32>}, {pipeline_mode = #tpu.pipeline_mode<synchronous>, transform_indices = @transform_3, window_bounds = array<i64: 1, 32>}, {pipeline_mode = #tpu.pipeline_mode<synchronous>, transform_indices = @transform_4, window_bounds = array<i64: 1, 32>}, {pipeline_mode = #tpu.pipeline_mode<synchronous>, transform_indices = @transform_5, window_bounds = array<i64: 1, 32>}, {pipeline_mode = #tpu.pipeline_mode<synchronous>, transform_indices = @transform_6, window_bounds = array<i64: 32, 128>}, {pipeline_mode = #tpu.pipeline_mode<synchronous>, transform_indices = @transform_7, window_bounds = array<i64: 1, 128>}, {pipeline_mode = #tpu.pipeline_mode<synchronous>, transform_indices = @transform_8, window_bounds = array<i64: 128, 32>}, {pipeline_mode = #tpu.pipeline_mode<synchronous>, transform_indices = @transform_9, window_bounds = array<i64: 1, 32>}, {pipeline_mode = #tpu.pipeline_mode<synchronous>, transform_indices = @transform_10, window_bounds = array<i64: 1, 32>}, {transform_indices = @transform_11, window_bounds = array<i64: 1, 2, 4, 32>}]} {
    %c2_i32 = arith.constant 2 : i32
    %0 = arith.muli %arg1, %c2_i32 : i32
    %c0 = arith.constant 0 : index
    %1 = arith.index_cast %0 : i32 to index
    %c0_0 = arith.constant 0 : index
    %c0_1 = arith.constant 0 : index
    %2 = vector.load %arg2[%c0, %1, %c0_0, %c0_1] : memref<1x14x10x32xf32, #tpu.memory_space<vmem>>, vector<1x8x10x32xf32>
    %3 = vector.shape_cast %2 : vector<1x8x10x32xf32> to vector<8x10x32xf32>
    %c0_2 = arith.constant 0 : index
    %c0_3 = arith.constant 0 : index
    %4 = vector.load %arg4[%c0_2, %c0_3] : memref<49x32xf32, #tpu.memory_space<vmem>>, vector<49x32xf32>
    %cst = arith.constant 0.000000e+00 : f32
    %5 = vector.broadcast %cst : f32 to vector<2x4x32xf32>
    %6 = vector.extract_strided_slice %3 {offsets = [0, 0, 0], sizes = [8, 4, 32], strides = [1, 1, 1]} : vector<8x10x32xf32> to vector<8x4x32xf32>
    %7 = vector.extract_strided_slice %6 {offsets = [0, 0, 0], sizes = [2, 4, 32], strides = [1, 1, 1]} : vector<8x4x32xf32> to vector<2x4x32xf32>
    %8 = vector.extract_strided_slice %4 {offsets = [0, 0], sizes = [1, 32], strides = [1, 1]} : vector<49x32xf32> to vector<1x32xf32>
    %9 = vector.shape_cast %8 : vector<1x32xf32> to vector<32xf32>
    %10 = vector.shape_cast %9 : vector<32xf32> to vector<1x1x32xf32>
    %11 = vector.broadcast %10 : vector<1x1x32xf32> to vector<2x4x32xf32>
    %12 = arith.mulf %7, %11 : vector<2x4x32xf32>
    %13 = arith.addf %5, %12 : vector<2x4x32xf32>
    %14 = vector.extract_strided_slice %6 {offsets = [1, 0, 0], sizes = [2, 4, 32], strides = [1, 1, 1]} : vector<8x4x32xf32> to vector<2x4x32xf32>
    %15 = vector.extract_strided_slice %4 {offsets = [7, 0], sizes = [1, 32], strides = [1, 1]} : vector<49x32xf32> to vector<1x32xf32>
    %16 = vector.shape_cast %15 : vector<1x32xf32> to vector<32xf32>
    %17 = vector.shape_cast %16 : vector<32xf32> to vector<1x1x32xf32>
    %18 = vector.broadcast %17 : vector<1x1x32xf32> to vector<2x4x32xf32>
    %19 = arith.mulf %14, %18 : vector<2x4x32xf32>
    %20 = arith.addf %13, %19 : vector<2x4x32xf32>
    %21 = vector.extract_strided_slice %6 {offsets = [2, 0, 0], sizes = [2, 4, 32], strides = [1, 1, 1]} : vector<8x4x32xf32> to vector<2x4x32xf32>
    %22 = vector.extract_strided_slice %4 {offsets = [14, 0], sizes = [1, 32], strides = [1, 1]} : vector<49x32xf32> to vector<1x32xf32>
    %23 = vector.shape_cast %22 : vector<1x32xf32> to vector<32xf32>
    %24 = vector.shape_cast %23 : vector<32xf32> to vector<1x1x32xf32>
    %25 = vector.broadcast %24 : vector<1x1x32xf32> to vector<2x4x32xf32>
    %26 = arith.mulf %21, %25 : vector<2x4x32xf32>
    %27 = arith.addf %20, %26 : vector<2x4x32xf32>
    %28 = vector.extract_strided_slice %6 {offsets = [3, 0, 0], sizes = [2, 4, 32], strides = [1, 1, 1]} : vector<8x4x32xf32> to vector<2x4x32xf32>
    %29 = vector.extract_strided_slice %4 {offsets = [21, 0], sizes = [1, 32], strides = [1, 1]} : vector<49x32xf32> to vector<1x32xf32>
    %30 = vector.shape_cast %29 : vector<1x32xf32> to vector<32xf32>
    %31 = vector.shape_cast %30 : vector<32xf32> to vector<1x1x32xf32>
    %32 = vector.broadcast %31 : vector<1x1x32xf32> to vector<2x4x32xf32>
    %33 = arith.mulf %28, %32 : vector<2x4x32xf32>
    %34 = arith.addf %27, %33 : vector<2x4x32xf32>
    %35 = vector.extract_strided_slice %6 {offsets = [4, 0, 0], sizes = [2, 4, 32], strides = [1, 1, 1]} : vector<8x4x32xf32> to vector<2x4x32xf32>
    %36 = vector.extract_strided_slice %4 {offsets = [28, 0], sizes = [1, 32], strides = [1, 1]} : vector<49x32xf32> to vector<1x32xf32>
    %37 = vector.shape_cast %36 : vector<1x32xf32> to vector<32xf32>
    %38 = vector.shape_cast %37 : vector<32xf32> to vector<1x1x32xf32>
    %39 = vector.broadcast %38 : vector<1x1x32xf32> to vector<2x4x32xf32>
    %40 = arith.mulf %35, %39 : vector<2x4x32xf32>
    %41 = arith.addf %34, %40 : vector<2x4x32xf32>
    %42 = vector.extract_strided_slice %6 {offsets = [5, 0, 0], sizes = [2, 4, 32], strides = [1, 1, 1]} : vector<8x4x32xf32> to vector<2x4x32xf32>
    %43 = vector.extract_strided_slice %4 {offsets = [35, 0], sizes = [1, 32], strides = [1, 1]} : vector<49x32xf32> to vector<1x32xf32>
    %44 = vector.shape_cast %43 : vector<1x32xf32> to vector<32xf32>
    %45 = vector.shape_cast %44 : vector<32xf32> to vector<1x1x32xf32>
    %46 = vector.broadcast %45 : vector<1x1x32xf32> to vector<2x4x32xf32>
    %47 = arith.mulf %42, %46 : vector<2x4x32xf32>
    %48 = arith.addf %41, %47 : vector<2x4x32xf32>
    %49 = vector.extract_strided_slice %6 {offsets = [6, 0, 0], sizes = [2, 4, 32], strides = [1, 1, 1]} : vector<8x4x32xf32> to vector<2x4x32xf32>
    %50 = vector.extract_strided_slice %4 {offsets = [42, 0], sizes = [1, 32], strides = [1, 1]} : vector<49x32xf32> to vector<1x32xf32>
    %51 = vector.shape_cast %50 : vector<1x32xf32> to vector<32xf32>
    %52 = vector.shape_cast %51 : vector<32xf32> to vector<1x1x32xf32>
    %53 = vector.broadcast %52 : vector<1x1x32xf32> to vector<2x4x32xf32>
    %54 = arith.mulf %49, %53 : vector<2x4x32xf32>
    %55 = arith.addf %48, %54 : vector<2x4x32xf32>
    %56 = vector.extract_strided_slice %3 {offsets = [0, 1, 0], sizes = [8, 4, 32], strides = [1, 1, 1]} : vector<8x10x32xf32> to vector<8x4x32xf32>
    %57 = vector.extract_strided_slice %56 {offsets = [0, 0, 0], sizes = [2, 4, 32], strides = [1, 1, 1]} : vector<8x4x32xf32> to vector<2x4x32xf32>
    %58 = vector.extract_strided_slice %4 {offsets = [1, 0], sizes = [1, 32], strides = [1, 1]} : vector<49x32xf32> to vector<1x32xf32>
    %59 = vector.shape_cast %58 : vector<1x32xf32> to vector<32xf32>
    %60 = vector.shape_cast %59 : vector<32xf32> to vector<1x1x32xf32>
    %61 = vector.broadcast %60 : vector<1x1x32xf32> to vector<2x4x32xf32>
    %62 = arith.mulf %57, %61 : vector<2x4x32xf32>
    %63 = arith.addf %55, %62 : vector<2x4x32xf32>
    %64 = vector.extract_strided_slice %56 {offsets = [1, 0, 0], sizes = [2, 4, 32], strides = [1, 1, 1]} : vector<8x4x32xf32> to vector<2x4x32xf32>
    %65 = vector.extract_strided_slice %4 {offsets = [8, 0], sizes = [1, 32], strides = [1, 1]} : vector<49x32xf32> to vector<1x32xf32>
    %66 = vector.shape_cast %65 : vector<1x32xf32> to vector<32xf32>
    %67 = vector.shape_cast %66 : vector<32xf32> to vector<1x1x32xf32>
    %68 = vector.broadcast %67 : vector<1x1x32xf32> to vector<2x4x32xf32>
    %69 = arith.mulf %64, %68 : vector<2x4x32xf32>
    %70 = arith.addf %63, %69 : vector<2x4x32xf32>
    %71 = vector.extract_strided_slice %56 {offsets = [2, 0, 0], sizes = [2, 4, 32], strides = [1, 1, 1]} : vector<8x4x32xf32> to vector<2x4x32xf32>
    %72 = vector.extract_strided_slice %4 {offsets = [15, 0], sizes = [1, 32], strides = [1, 1]} : vector<49x32xf32> to vector<1x32xf32>
    %73 = vector.shape_cast %72 : vector<1x32xf32> to vector<32xf32>
    %74 = vector.shape_cast %73 : vector<32xf32> to vector<1x1x32xf32>
    %75 = vector.broadcast %74 : vector<1x1x32xf32> to vector<2x4x32xf32>
    %76 = arith.mulf %71, %75 : vector<2x4x32xf32>
    %77 = arith.addf %70, %76 : vector<2x4x32xf32>
    %78 = vector.extract_strided_slice %56 {offsets = [3, 0, 0], sizes = [2, 4, 32], strides = [1, 1, 1]} : vector<8x4x32xf32> to vector<2x4x32xf32>
    %79 = vector.extract_strided_slice %4 {offsets = [22, 0], sizes = [1, 32], strides = [1, 1]} : vector<49x32xf32> to vector<1x32xf32>
    %80 = vector.shape_cast %79 : vector<1x32xf32> to vector<32xf32>
    %81 = vector.shape_cast %80 : vector<32xf32> to vector<1x1x32xf32>
    %82 = vector.broadcast %81 : vector<1x1x32xf32> to vector<2x4x32xf32>
    %83 = arith.mulf %78, %82 : vector<2x4x32xf32>
    %84 = arith.addf %77, %83 : vector<2x4x32xf32>
    %85 = vector.extract_strided_slice %56 {offsets = [4, 0, 0], sizes = [2, 4, 32], strides = [1, 1, 1]} : vector<8x4x32xf32> to vector<2x4x32xf32>
    %86 = vector.extract_strided_slice %4 {offsets = [29, 0], sizes = [1, 32], strides = [1, 1]} : vector<49x32xf32> to vector<1x32xf32>
    %87 = vector.shape_cast %86 : vector<1x32xf32> to vector<32xf32>
    %88 = vector.shape_cast %87 : vector<32xf32> to vector<1x1x32xf32>
    %89 = vector.broadcast %88 : vector<1x1x32xf32> to vector<2x4x32xf32>
    %90 = arith.mulf %85, %89 : vector<2x4x32xf32>
    %91 = arith.addf %84, %90 : vector<2x4x32xf32>
    %92 = vector.extract_strided_slice %56 {offsets = [5, 0, 0], sizes = [2, 4, 32], strides = [1, 1, 1]} : vector<8x4x32xf32> to vector<2x4x32xf32>
    %93 = vector.extract_strided_slice %4 {offsets = [36, 0], sizes = [1, 32], strides = [1, 1]} : vector<49x32xf32> to vector<1x32xf32>
    %94 = vector.shape_cast %93 : vector<1x32xf32> to vector<32xf32>
    %95 = vector.shape_cast %94 : vector<32xf32> to vector<1x1x32xf32>
    %96 = vector.broadcast %95 : vector<1x1x32xf32> to vector<2x4x32xf32>
    %97 = arith.mulf %92, %96 : vector<2x4x32xf32>
    %98 = arith.addf %91, %97 : vector<2x4x32xf32>
    %99 = vector.extract_strided_slice %56 {offsets = [6, 0, 0], sizes = [2, 4, 32], strides = [1, 1, 1]} : vector<8x4x32xf32> to vector<2x4x32xf32>
    %100 = vector.extract_strided_slice %4 {offsets = [43, 0], sizes = [1, 32], strides = [1, 1]} : vector<49x32xf32> to vector<1x32xf32>
    %101 = vector.shape_cast %100 : vector<1x32xf32> to vector<32xf32>
    %102 = vector.shape_cast %101 : vector<32xf32> to vector<1x1x32xf32>
    %103 = vector.broadcast %102 : vector<1x1x32xf32> to vector<2x4x32xf32>
    %104 = arith.mulf %99, %103 : vector<2x4x32xf32>
    %105 = arith.addf %98, %104 : vector<2x4x32xf32>
    %106 = vector.extract_strided_slice %3 {offsets = [0, 2, 0], sizes = [8, 4, 32], strides = [1, 1, 1]} : vector<8x10x32xf32> to vector<8x4x32xf32>
    %107 = vector.extract_strided_slice %106 {offsets = [0, 0, 0], sizes = [2, 4, 32], strides = [1, 1, 1]} : vector<8x4x32xf32> to vector<2x4x32xf32>
    %108 = vector.extract_strided_slice %4 {offsets = [2, 0], sizes = [1, 32], strides = [1, 1]} : vector<49x32xf32> to vector<1x32xf32>
    %109 = vector.shape_cast %108 : vector<1x32xf32> to vector<32xf32>
    %110 = vector.shape_cast %109 : vector<32xf32> to vector<1x1x32xf32>
    %111 = vector.broadcast %110 : vector<1x1x32xf32> to vector<2x4x32xf32>
    %112 = arith.mulf %107, %111 : vector<2x4x32xf32>
    %113 = arith.addf %105, %112 : vector<2x4x32xf32>
    %114 = vector.extract_strided_slice %106 {offsets = [1, 0, 0], sizes = [2, 4, 32], strides = [1, 1, 1]} : vector<8x4x32xf32> to vector<2x4x32xf32>
    %115 = vector.extract_strided_slice %4 {offsets = [9, 0], sizes = [1, 32], strides = [1, 1]} : vector<49x32xf32> to vector<1x32xf32>
    %116 = vector.shape_cast %115 : vector<1x32xf32> to vector<32xf32>
    %117 = vector.shape_cast %116 : vector<32xf32> to vector<1x1x32xf32>
    %118 = vector.broadcast %117 : vector<1x1x32xf32> to vector<2x4x32xf32>
    %119 = arith.mulf %114, %118 : vector<2x4x32xf32>
    %120 = arith.addf %113, %119 : vector<2x4x32xf32>
    %121 = vector.extract_strided_slice %106 {offsets = [2, 0, 0], sizes = [2, 4, 32], strides = [1, 1, 1]} : vector<8x4x32xf32> to vector<2x4x32xf32>
    %122 = vector.extract_strided_slice %4 {offsets = [16, 0], sizes = [1, 32], strides = [1, 1]} : vector<49x32xf32> to vector<1x32xf32>
    %123 = vector.shape_cast %122 : vector<1x32xf32> to vector<32xf32>
    %124 = vector.shape_cast %123 : vector<32xf32> to vector<1x1x32xf32>
    %125 = vector.broadcast %124 : vector<1x1x32xf32> to vector<2x4x32xf32>
    %126 = arith.mulf %121, %125 : vector<2x4x32xf32>
    %127 = arith.addf %120, %126 : vector<2x4x32xf32>
    %128 = vector.extract_strided_slice %106 {offsets = [3, 0, 0], sizes = [2, 4, 32], strides = [1, 1, 1]} : vector<8x4x32xf32> to vector<2x4x32xf32>
    %129 = vector.extract_strided_slice %4 {offsets = [23, 0], sizes = [1, 32], strides = [1, 1]} : vector<49x32xf32> to vector<1x32xf32>
    %130 = vector.shape_cast %129 : vector<1x32xf32> to vector<32xf32>
    %131 = vector.shape_cast %130 : vector<32xf32> to vector<1x1x32xf32>
    %132 = vector.broadcast %131 : vector<1x1x32xf32> to vector<2x4x32xf32>
    %133 = arith.mulf %128, %132 : vector<2x4x32xf32>
    %134 = arith.addf %127, %133 : vector<2x4x32xf32>
    %135 = vector.extract_strided_slice %106 {offsets = [4, 0, 0], sizes = [2, 4, 32], strides = [1, 1, 1]} : vector<8x4x32xf32> to vector<2x4x32xf32>
    %136 = vector.extract_strided_slice %4 {offsets = [30, 0], sizes = [1, 32], strides = [1, 1]} : vector<49x32xf32> to vector<1x32xf32>
    %137 = vector.shape_cast %136 : vector<1x32xf32> to vector<32xf32>
    %138 = vector.shape_cast %137 : vector<32xf32> to vector<1x1x32xf32>
    %139 = vector.broadcast %138 : vector<1x1x32xf32> to vector<2x4x32xf32>
    %140 = arith.mulf %135, %139 : vector<2x4x32xf32>
    %141 = arith.addf %134, %140 : vector<2x4x32xf32>
    %142 = vector.extract_strided_slice %106 {offsets = [5, 0, 0], sizes = [2, 4, 32], strides = [1, 1, 1]} : vector<8x4x32xf32> to vector<2x4x32xf32>
    %143 = vector.extract_strided_slice %4 {offsets = [37, 0], sizes = [1, 32], strides = [1, 1]} : vector<49x32xf32> to vector<1x32xf32>
    %144 = vector.shape_cast %143 : vector<1x32xf32> to vector<32xf32>
    %145 = vector.shape_cast %144 : vector<32xf32> to vector<1x1x32xf32>
    %146 = vector.broadcast %145 : vector<1x1x32xf32> to vector<2x4x32xf32>
    %147 = arith.mulf %142, %146 : vector<2x4x32xf32>
    %148 = arith.addf %141, %147 : vector<2x4x32xf32>
    %149 = vector.extract_strided_slice %106 {offsets = [6, 0, 0], sizes = [2, 4, 32], strides = [1, 1, 1]} : vector<8x4x32xf32> to vector<2x4x32xf32>
    %150 = vector.extract_strided_slice %4 {offsets = [44, 0], sizes = [1, 32], strides = [1, 1]} : vector<49x32xf32> to vector<1x32xf32>
    %151 = vector.shape_cast %150 : vector<1x32xf32> to vector<32xf32>
    %152 = vector.shape_cast %151 : vector<32xf32> to vector<1x1x32xf32>
    %153 = vector.broadcast %152 : vector<1x1x32xf32> to vector<2x4x32xf32>
    %154 = arith.mulf %149, %153 : vector<2x4x32xf32>
    %155 = arith.addf %148, %154 : vector<2x4x32xf32>
    %156 = vector.extract_strided_slice %3 {offsets = [0, 3, 0], sizes = [8, 4, 32], strides = [1, 1, 1]} : vector<8x10x32xf32> to vector<8x4x32xf32>
    %157 = vector.extract_strided_slice %156 {offsets = [0, 0, 0], sizes = [2, 4, 32], strides = [1, 1, 1]} : vector<8x4x32xf32> to vector<2x4x32xf32>
    %158 = vector.extract_strided_slice %4 {offsets = [3, 0], sizes = [1, 32], strides = [1, 1]} : vector<49x32xf32> to vector<1x32xf32>
    %159 = vector.shape_cast %158 : vector<1x32xf32> to vector<32xf32>
    %160 = vector.shape_cast %159 : vector<32xf32> to vector<1x1x32xf32>
    %161 = vector.broadcast %160 : vector<1x1x32xf32> to vector<2x4x32xf32>
    %162 = arith.mulf %157, %161 : vector<2x4x32xf32>
    %163 = arith.addf %155, %162 : vector<2x4x32xf32>
    %164 = vector.extract_strided_slice %156 {offsets = [1, 0, 0], sizes = [2, 4, 32], strides = [1, 1, 1]} : vector<8x4x32xf32> to vector<2x4x32xf32>
    %165 = vector.extract_strided_slice %4 {offsets = [10, 0], sizes = [1, 32], strides = [1, 1]} : vector<49x32xf32> to vector<1x32xf32>
    %166 = vector.shape_cast %165 : vector<1x32xf32> to vector<32xf32>
    %167 = vector.shape_cast %166 : vector<32xf32> to vector<1x1x32xf32>
    %168 = vector.broadcast %167 : vector<1x1x32xf32> to vector<2x4x32xf32>
    %169 = arith.mulf %164, %168 : vector<2x4x32xf32>
    %170 = arith.addf %163, %169 : vector<2x4x32xf32>
    %171 = vector.extract_strided_slice %156 {offsets = [2, 0, 0], sizes = [2, 4, 32], strides = [1, 1, 1]} : vector<8x4x32xf32> to vector<2x4x32xf32>
    %172 = vector.extract_strided_slice %4 {offsets = [17, 0], sizes = [1, 32], strides = [1, 1]} : vector<49x32xf32> to vector<1x32xf32>
    %173 = vector.shape_cast %172 : vector<1x32xf32> to vector<32xf32>
    %174 = vector.shape_cast %173 : vector<32xf32> to vector<1x1x32xf32>
    %175 = vector.broadcast %174 : vector<1x1x32xf32> to vector<2x4x32xf32>
    %176 = arith.mulf %171, %175 : vector<2x4x32xf32>
    %177 = arith.addf %170, %176 : vector<2x4x32xf32>
    %178 = vector.extract_strided_slice %156 {offsets = [3, 0, 0], sizes = [2, 4, 32], strides = [1, 1, 1]} : vector<8x4x32xf32> to vector<2x4x32xf32>
    %179 = vector.extract_strided_slice %4 {offsets = [24, 0], sizes = [1, 32], strides = [1, 1]} : vector<49x32xf32> to vector<1x32xf32>
    %180 = vector.shape_cast %179 : vector<1x32xf32> to vector<32xf32>
    %181 = vector.shape_cast %180 : vector<32xf32> to vector<1x1x32xf32>
    %182 = vector.broadcast %181 : vector<1x1x32xf32> to vector<2x4x32xf32>
    %183 = arith.mulf %178, %182 : vector<2x4x32xf32>
    %184 = arith.addf %177, %183 : vector<2x4x32xf32>
    %185 = vector.extract_strided_slice %156 {offsets = [4, 0, 0], sizes = [2, 4, 32], strides = [1, 1, 1]} : vector<8x4x32xf32> to vector<2x4x32xf32>
    %186 = vector.extract_strided_slice %4 {offsets = [31, 0], sizes = [1, 32], strides = [1, 1]} : vector<49x32xf32> to vector<1x32xf32>
    %187 = vector.shape_cast %186 : vector<1x32xf32> to vector<32xf32>
    %188 = vector.shape_cast %187 : vector<32xf32> to vector<1x1x32xf32>
    %189 = vector.broadcast %188 : vector<1x1x32xf32> to vector<2x4x32xf32>
    %190 = arith.mulf %185, %189 : vector<2x4x32xf32>
    %191 = arith.addf %184, %190 : vector<2x4x32xf32>
    %192 = vector.extract_strided_slice %156 {offsets = [5, 0, 0], sizes = [2, 4, 32], strides = [1, 1, 1]} : vector<8x4x32xf32> to vector<2x4x32xf32>
    %193 = vector.extract_strided_slice %4 {offsets = [38, 0], sizes = [1, 32], strides = [1, 1]} : vector<49x32xf32> to vector<1x32xf32>
    %194 = vector.shape_cast %193 : vector<1x32xf32> to vector<32xf32>
    %195 = vector.shape_cast %194 : vector<32xf32> to vector<1x1x32xf32>
    %196 = vector.broadcast %195 : vector<1x1x32xf32> to vector<2x4x32xf32>
    %197 = arith.mulf %192, %196 : vector<2x4x32xf32>
    %198 = arith.addf %191, %197 : vector<2x4x32xf32>
    %199 = vector.extract_strided_slice %156 {offsets = [6, 0, 0], sizes = [2, 4, 32], strides = [1, 1, 1]} : vector<8x4x32xf32> to vector<2x4x32xf32>
    %200 = vector.extract_strided_slice %4 {offsets = [45, 0], sizes = [1, 32], strides = [1, 1]} : vector<49x32xf32> to vector<1x32xf32>
    %201 = vector.shape_cast %200 : vector<1x32xf32> to vector<32xf32>
    %202 = vector.shape_cast %201 : vector<32xf32> to vector<1x1x32xf32>
    %203 = vector.broadcast %202 : vector<1x1x32xf32> to vector<2x4x32xf32>
    %204 = arith.mulf %199, %203 : vector<2x4x32xf32>
    %205 = arith.addf %198, %204 : vector<2x4x32xf32>
    %206 = vector.extract_strided_slice %3 {offsets = [0, 4, 0], sizes = [8, 4, 32], strides = [1, 1, 1]} : vector<8x10x32xf32> to vector<8x4x32xf32>
    %207 = vector.extract_strided_slice %206 {offsets = [0, 0, 0], sizes = [2, 4, 32], strides = [1, 1, 1]} : vector<8x4x32xf32> to vector<2x4x32xf32>
    %208 = vector.extract_strided_slice %4 {offsets = [4, 0], sizes = [1, 32], strides = [1, 1]} : vector<49x32xf32> to vector<1x32xf32>
    %209 = vector.shape_cast %208 : vector<1x32xf32> to vector<32xf32>
    %210 = vector.shape_cast %209 : vector<32xf32> to vector<1x1x32xf32>
    %211 = vector.broadcast %210 : vector<1x1x32xf32> to vector<2x4x32xf32>
    %212 = arith.mulf %207, %211 : vector<2x4x32xf32>
    %213 = arith.addf %205, %212 : vector<2x4x32xf32>
    %214 = vector.extract_strided_slice %206 {offsets = [1, 0, 0], sizes = [2, 4, 32], strides = [1, 1, 1]} : vector<8x4x32xf32> to vector<2x4x32xf32>
    %215 = vector.extract_strided_slice %4 {offsets = [11, 0], sizes = [1, 32], strides = [1, 1]} : vector<49x32xf32> to vector<1x32xf32>
    %216 = vector.shape_cast %215 : vector<1x32xf32> to vector<32xf32>
    %217 = vector.shape_cast %216 : vector<32xf32> to vector<1x1x32xf32>
    %218 = vector.broadcast %217 : vector<1x1x32xf32> to vector<2x4x32xf32>
    %219 = arith.mulf %214, %218 : vector<2x4x32xf32>
    %220 = arith.addf %213, %219 : vector<2x4x32xf32>
    %221 = vector.extract_strided_slice %206 {offsets = [2, 0, 0], sizes = [2, 4, 32], strides = [1, 1, 1]} : vector<8x4x32xf32> to vector<2x4x32xf32>
    %222 = vector.extract_strided_slice %4 {offsets = [18, 0], sizes = [1, 32], strides = [1, 1]} : vector<49x32xf32> to vector<1x32xf32>
    %223 = vector.shape_cast %222 : vector<1x32xf32> to vector<32xf32>
    %224 = vector.shape_cast %223 : vector<32xf32> to vector<1x1x32xf32>
    %225 = vector.broadcast %224 : vector<1x1x32xf32> to vector<2x4x32xf32>
    %226 = arith.mulf %221, %225 : vector<2x4x32xf32>
    %227 = arith.addf %220, %226 : vector<2x4x32xf32>
    %228 = vector.extract_strided_slice %206 {offsets = [3, 0, 0], sizes = [2, 4, 32], strides = [1, 1, 1]} : vector<8x4x32xf32> to vector<2x4x32xf32>
    %229 = vector.extract_strided_slice %4 {offsets = [25, 0], sizes = [1, 32], strides = [1, 1]} : vector<49x32xf32> to vector<1x32xf32>
    %230 = vector.shape_cast %229 : vector<1x32xf32> to vector<32xf32>
    %231 = vector.shape_cast %230 : vector<32xf32> to vector<1x1x32xf32>
    %232 = vector.broadcast %231 : vector<1x1x32xf32> to vector<2x4x32xf32>
    %233 = arith.mulf %228, %232 : vector<2x4x32xf32>
    %234 = arith.addf %227, %233 : vector<2x4x32xf32>
    %235 = vector.extract_strided_slice %206 {offsets = [4, 0, 0], sizes = [2, 4, 32], strides = [1, 1, 1]} : vector<8x4x32xf32> to vector<2x4x32xf32>
    %236 = vector.extract_strided_slice %4 {offsets = [32, 0], sizes = [1, 32], strides = [1, 1]} : vector<49x32xf32> to vector<1x32xf32>
    %237 = vector.shape_cast %236 : vector<1x32xf32> to vector<32xf32>
    %238 = vector.shape_cast %237 : vector<32xf32> to vector<1x1x32xf32>
    %239 = vector.broadcast %238 : vector<1x1x32xf32> to vector<2x4x32xf32>
    %240 = arith.mulf %235, %239 : vector<2x4x32xf32>
    %241 = arith.addf %234, %240 : vector<2x4x32xf32>
    %242 = vector.extract_strided_slice %206 {offsets = [5, 0, 0], sizes = [2, 4, 32], strides = [1, 1, 1]} : vector<8x4x32xf32> to vector<2x4x32xf32>
    %243 = vector.extract_strided_slice %4 {offsets = [39, 0], sizes = [1, 32], strides = [1, 1]} : vector<49x32xf32> to vector<1x32xf32>
    %244 = vector.shape_cast %243 : vector<1x32xf32> to vector<32xf32>
    %245 = vector.shape_cast %244 : vector<32xf32> to vector<1x1x32xf32>
    %246 = vector.broadcast %245 : vector<1x1x32xf32> to vector<2x4x32xf32>
    %247 = arith.mulf %242, %246 : vector<2x4x32xf32>
    %248 = arith.addf %241, %247 : vector<2x4x32xf32>
    %249 = vector.extract_strided_slice %206 {offsets = [6, 0, 0], sizes = [2, 4, 32], strides = [1, 1, 1]} : vector<8x4x32xf32> to vector<2x4x32xf32>
    %250 = vector.extract_strided_slice %4 {offsets = [46, 0], sizes = [1, 32], strides = [1, 1]} : vector<49x32xf32> to vector<1x32xf32>
    %251 = vector.shape_cast %250 : vector<1x32xf32> to vector<32xf32>
    %252 = vector.shape_cast %251 : vector<32xf32> to vector<1x1x32xf32>
    %253 = vector.broadcast %252 : vector<1x1x32xf32> to vector<2x4x32xf32>
    %254 = arith.mulf %249, %253 : vector<2x4x32xf32>
    %255 = arith.addf %248, %254 : vector<2x4x32xf32>
    %256 = vector.extract_strided_slice %3 {offsets = [0, 5, 0], sizes = [8, 4, 32], strides = [1, 1, 1]} : vector<8x10x32xf32> to vector<8x4x32xf32>
    %257 = vector.extract_strided_slice %256 {offsets = [0, 0, 0], sizes = [2, 4, 32], strides = [1, 1, 1]} : vector<8x4x32xf32> to vector<2x4x32xf32>
    %258 = vector.extract_strided_slice %4 {offsets = [5, 0], sizes = [1, 32], strides = [1, 1]} : vector<49x32xf32> to vector<1x32xf32>
    %259 = vector.shape_cast %258 : vector<1x32xf32> to vector<32xf32>
    %260 = vector.shape_cast %259 : vector<32xf32> to vector<1x1x32xf32>
    %261 = vector.broadcast %260 : vector<1x1x32xf32> to vector<2x4x32xf32>
    %262 = arith.mulf %257, %261 : vector<2x4x32xf32>
    %263 = arith.addf %255, %262 : vector<2x4x32xf32>
    %264 = vector.extract_strided_slice %256 {offsets = [1, 0, 0], sizes = [2, 4, 32], strides = [1, 1, 1]} : vector<8x4x32xf32> to vector<2x4x32xf32>
    %265 = vector.extract_strided_slice %4 {offsets = [12, 0], sizes = [1, 32], strides = [1, 1]} : vector<49x32xf32> to vector<1x32xf32>
    %266 = vector.shape_cast %265 : vector<1x32xf32> to vector<32xf32>
    %267 = vector.shape_cast %266 : vector<32xf32> to vector<1x1x32xf32>
    %268 = vector.broadcast %267 : vector<1x1x32xf32> to vector<2x4x32xf32>
    %269 = arith.mulf %264, %268 : vector<2x4x32xf32>
    %270 = arith.addf %263, %269 : vector<2x4x32xf32>
    %271 = vector.extract_strided_slice %256 {offsets = [2, 0, 0], sizes = [2, 4, 32], strides = [1, 1, 1]} : vector<8x4x32xf32> to vector<2x4x32xf32>
    %272 = vector.extract_strided_slice %4 {offsets = [19, 0], sizes = [1, 32], strides = [1, 1]} : vector<49x32xf32> to vector<1x32xf32>
    %273 = vector.shape_cast %272 : vector<1x32xf32> to vector<32xf32>
    %274 = vector.shape_cast %273 : vector<32xf32> to vector<1x1x32xf32>
    %275 = vector.broadcast %274 : vector<1x1x32xf32> to vector<2x4x32xf32>
    %276 = arith.mulf %271, %275 : vector<2x4x32xf32>
    %277 = arith.addf %270, %276 : vector<2x4x32xf32>
    %278 = vector.extract_strided_slice %256 {offsets = [3, 0, 0], sizes = [2, 4, 32], strides = [1, 1, 1]} : vector<8x4x32xf32> to vector<2x4x32xf32>
    %279 = vector.extract_strided_slice %4 {offsets = [26, 0], sizes = [1, 32], strides = [1, 1]} : vector<49x32xf32> to vector<1x32xf32>
    %280 = vector.shape_cast %279 : vector<1x32xf32> to vector<32xf32>
    %281 = vector.shape_cast %280 : vector<32xf32> to vector<1x1x32xf32>
    %282 = vector.broadcast %281 : vector<1x1x32xf32> to vector<2x4x32xf32>
    %283 = arith.mulf %278, %282 : vector<2x4x32xf32>
    %284 = arith.addf %277, %283 : vector<2x4x32xf32>
    %285 = vector.extract_strided_slice %256 {offsets = [4, 0, 0], sizes = [2, 4, 32], strides = [1, 1, 1]} : vector<8x4x32xf32> to vector<2x4x32xf32>
    %286 = vector.extract_strided_slice %4 {offsets = [33, 0], sizes = [1, 32], strides = [1, 1]} : vector<49x32xf32> to vector<1x32xf32>
    %287 = vector.shape_cast %286 : vector<1x32xf32> to vector<32xf32>
    %288 = vector.shape_cast %287 : vector<32xf32> to vector<1x1x32xf32>
    %289 = vector.broadcast %288 : vector<1x1x32xf32> to vector<2x4x32xf32>
    %290 = arith.mulf %285, %289 : vector<2x4x32xf32>
    %291 = arith.addf %284, %290 : vector<2x4x32xf32>
    %292 = vector.extract_strided_slice %256 {offsets = [5, 0, 0], sizes = [2, 4, 32], strides = [1, 1, 1]} : vector<8x4x32xf32> to vector<2x4x32xf32>
    %293 = vector.extract_strided_slice %4 {offsets = [40, 0], sizes = [1, 32], strides = [1, 1]} : vector<49x32xf32> to vector<1x32xf32>
    %294 = vector.shape_cast %293 : vector<1x32xf32> to vector<32xf32>
    %295 = vector.shape_cast %294 : vector<32xf32> to vector<1x1x32xf32>
    %296 = vector.broadcast %295 : vector<1x1x32xf32> to vector<2x4x32xf32>
    %297 = arith.mulf %292, %296 : vector<2x4x32xf32>
    %298 = arith.addf %291, %297 : vector<2x4x32xf32>
    %299 = vector.extract_strided_slice %256 {offsets = [6, 0, 0], sizes = [2, 4, 32], strides = [1, 1, 1]} : vector<8x4x32xf32> to vector<2x4x32xf32>
    %300 = vector.extract_strided_slice %4 {offsets = [47, 0], sizes = [1, 32], strides = [1, 1]} : vector<49x32xf32> to vector<1x32xf32>
    %301 = vector.shape_cast %300 : vector<1x32xf32> to vector<32xf32>
    %302 = vector.shape_cast %301 : vector<32xf32> to vector<1x1x32xf32>
    %303 = vector.broadcast %302 : vector<1x1x32xf32> to vector<2x4x32xf32>
    %304 = arith.mulf %299, %303 : vector<2x4x32xf32>
    %305 = arith.addf %298, %304 : vector<2x4x32xf32>
    %306 = vector.extract_strided_slice %3 {offsets = [0, 6, 0], sizes = [8, 4, 32], strides = [1, 1, 1]} : vector<8x10x32xf32> to vector<8x4x32xf32>
    %307 = vector.extract_strided_slice %306 {offsets = [0, 0, 0], sizes = [2, 4, 32], strides = [1, 1, 1]} : vector<8x4x32xf32> to vector<2x4x32xf32>
    %308 = vector.extract_strided_slice %4 {offsets = [6, 0], sizes = [1, 32], strides = [1, 1]} : vector<49x32xf32> to vector<1x32xf32>
    %309 = vector.shape_cast %308 : vector<1x32xf32> to vector<32xf32>
    %310 = vector.shape_cast %309 : vector<32xf32> to vector<1x1x32xf32>
    %311 = vector.broadcast %310 : vector<1x1x32xf32> to vector<2x4x32xf32>
    %312 = arith.mulf %307, %311 : vector<2x4x32xf32>
    %313 = arith.addf %305, %312 : vector<2x4x32xf32>
    %314 = vector.extract_strided_slice %306 {offsets = [1, 0, 0], sizes = [2, 4, 32], strides = [1, 1, 1]} : vector<8x4x32xf32> to vector<2x4x32xf32>
    %315 = vector.extract_strided_slice %4 {offsets = [13, 0], sizes = [1, 32], strides = [1, 1]} : vector<49x32xf32> to vector<1x32xf32>
    %316 = vector.shape_cast %315 : vector<1x32xf32> to vector<32xf32>
    %317 = vector.shape_cast %316 : vector<32xf32> to vector<1x1x32xf32>
    %318 = vector.broadcast %317 : vector<1x1x32xf32> to vector<2x4x32xf32>
    %319 = arith.mulf %314, %318 : vector<2x4x32xf32>
    %320 = arith.addf %313, %319 : vector<2x4x32xf32>
    %321 = vector.extract_strided_slice %306 {offsets = [2, 0, 0], sizes = [2, 4, 32], strides = [1, 1, 1]} : vector<8x4x32xf32> to vector<2x4x32xf32>
    %322 = vector.extract_strided_slice %4 {offsets = [20, 0], sizes = [1, 32], strides = [1, 1]} : vector<49x32xf32> to vector<1x32xf32>
    %323 = vector.shape_cast %322 : vector<1x32xf32> to vector<32xf32>
    %324 = vector.shape_cast %323 : vector<32xf32> to vector<1x1x32xf32>
    %325 = vector.broadcast %324 : vector<1x1x32xf32> to vector<2x4x32xf32>
    %326 = arith.mulf %321, %325 : vector<2x4x32xf32>
    %327 = arith.addf %320, %326 : vector<2x4x32xf32>
    %328 = vector.extract_strided_slice %306 {offsets = [3, 0, 0], sizes = [2, 4, 32], strides = [1, 1, 1]} : vector<8x4x32xf32> to vector<2x4x32xf32>
    %329 = vector.extract_strided_slice %4 {offsets = [27, 0], sizes = [1, 32], strides = [1, 1]} : vector<49x32xf32> to vector<1x32xf32>
    %330 = vector.shape_cast %329 : vector<1x32xf32> to vector<32xf32>
    %331 = vector.shape_cast %330 : vector<32xf32> to vector<1x1x32xf32>
    %332 = vector.broadcast %331 : vector<1x1x32xf32> to vector<2x4x32xf32>
    %333 = arith.mulf %328, %332 : vector<2x4x32xf32>
    %334 = arith.addf %327, %333 : vector<2x4x32xf32>
    %335 = vector.extract_strided_slice %306 {offsets = [4, 0, 0], sizes = [2, 4, 32], strides = [1, 1, 1]} : vector<8x4x32xf32> to vector<2x4x32xf32>
    %336 = vector.extract_strided_slice %4 {offsets = [34, 0], sizes = [1, 32], strides = [1, 1]} : vector<49x32xf32> to vector<1x32xf32>
    %337 = vector.shape_cast %336 : vector<1x32xf32> to vector<32xf32>
    %338 = vector.shape_cast %337 : vector<32xf32> to vector<1x1x32xf32>
    %339 = vector.broadcast %338 : vector<1x1x32xf32> to vector<2x4x32xf32>
    %340 = arith.mulf %335, %339 : vector<2x4x32xf32>
    %341 = arith.addf %334, %340 : vector<2x4x32xf32>
    %342 = vector.extract_strided_slice %306 {offsets = [5, 0, 0], sizes = [2, 4, 32], strides = [1, 1, 1]} : vector<8x4x32xf32> to vector<2x4x32xf32>
    %343 = vector.extract_strided_slice %4 {offsets = [41, 0], sizes = [1, 32], strides = [1, 1]} : vector<49x32xf32> to vector<1x32xf32>
    %344 = vector.shape_cast %343 : vector<1x32xf32> to vector<32xf32>
    %345 = vector.shape_cast %344 : vector<32xf32> to vector<1x1x32xf32>
    %346 = vector.broadcast %345 : vector<1x1x32xf32> to vector<2x4x32xf32>
    %347 = arith.mulf %342, %346 : vector<2x4x32xf32>
    %348 = arith.addf %341, %347 : vector<2x4x32xf32>
    %349 = vector.extract_strided_slice %306 {offsets = [6, 0, 0], sizes = [2, 4, 32], strides = [1, 1, 1]} : vector<8x4x32xf32> to vector<2x4x32xf32>
    %350 = vector.extract_strided_slice %4 {offsets = [48, 0], sizes = [1, 32], strides = [1, 1]} : vector<49x32xf32> to vector<1x32xf32>
    %351 = vector.shape_cast %350 : vector<1x32xf32> to vector<32xf32>
    %352 = vector.shape_cast %351 : vector<32xf32> to vector<1x1x32xf32>
    %353 = vector.broadcast %352 : vector<1x1x32xf32> to vector<2x4x32xf32>
    %354 = arith.mulf %349, %353 : vector<2x4x32xf32>
    %355 = arith.addf %348, %354 : vector<2x4x32xf32>
    %c0_4 = arith.constant 0 : index
    %c0_5 = arith.constant 0 : index
    %356 = vector.load %arg5[%c0_4, %c0_5] : memref<1x32xf32, #tpu.memory_space<vmem>>, vector<1x32xf32>
    %357 = vector.shape_cast %356 : vector<1x32xf32> to vector<32xf32>
    %358 = vector.shape_cast %357 : vector<32xf32> to vector<1x1x32xf32>
    %359 = vector.broadcast %358 : vector<1x1x32xf32> to vector<2x4x32xf32>
    %360 = arith.addf %355, %359 : vector<2x4x32xf32>
    %361 = vector.extract_strided_slice %360 {offsets = [0, 0, 0], sizes = [1, 4, 32], strides = [1, 1, 1]} : vector<2x4x32xf32> to vector<1x4x32xf32>
    %362 = vector.shape_cast %361 : vector<1x4x32xf32> to vector<4x32xf32>
    %c0_6 = arith.constant 0 : index
    %c0_7 = arith.constant 0 : index
    %363 = vector.load %arg14[%c0_6, %c0_7] : memref<8x32xf32, #tpu.memory_space<vmem>>, vector<4x32xf32>
    tpu.vector_store %arg14[%c0_6, %c0_7], %362 {strides = array<i32>} : memref<8x32xf32, #tpu.memory_space<vmem>>, vector<4x32xf32>,
    %364 = vector.extract_strided_slice %360 {offsets = [1, 0, 0], sizes = [1, 4, 32], strides = [1, 1, 1]} : vector<2x4x32xf32> to vector<1x4x32xf32>
    %365 = vector.shape_cast %364 : vector<1x4x32xf32> to vector<4x32xf32>
    %c4 = arith.constant 4 : index
    %c0_8 = arith.constant 0 : index
    %366 = vector.load %arg14[%c4, %c0_8] : memref<8x32xf32, #tpu.memory_space<vmem>>, vector<4x32xf32>
    tpu.vector_store %arg14[%c4, %c0_8], %365 {strides = array<i32>} : memref<8x32xf32, #tpu.memory_space<vmem>>, vector<4x32xf32>,
    %c0_9 = arith.constant 0 : index
    %c0_10 = arith.constant 0 : index
    %367 = vector.load %arg14[%c0_9, %c0_10] : memref<8x32xf32, #tpu.memory_space<vmem>>, vector<8x32xf32>
    %c0_11 = arith.constant 0 : index
    %c0_12 = arith.constant 0 : index
    %368 = vector.load %arg6[%c0_11, %c0_12] : memref<1x32xf32, #tpu.memory_space<vmem>>, vector<1x32xf32>
    %c0_13 = arith.constant 0 : index
    %c0_14 = arith.constant 0 : index
    %369 = vector.load %arg7[%c0_13, %c0_14] : memref<1x32xf32, #tpu.memory_space<vmem>>, vector<1x32xf32>
    %cst_15 = arith.constant dense<0.000000e+00> : vector<8xf32>
    %370 = vector.multi_reduction <add>, %367, %cst_15 [1] : vector<8x32xf32> to vector<8xf32>
    %371 = vector.shape_cast %370 : vector<8xf32> to vector<8x1xf32>
    %cst_16 = arith.constant 3.200000e+01 : f32
    %372 = vector.broadcast %cst_16 : f32 to vector<8x1xf32>
    %373 = arith.divf %371, %372 : vector<8x1xf32>
    %374 = vector.broadcast %373 : vector<8x1xf32> to vector<8x32xf32>
    %375 = arith.subf %367, %374 : vector<8x32xf32>
    %376 = arith.mulf %375, %375 : vector<8x32xf32>
    %cst_17 = arith.constant dense<0.000000e+00> : vector<8xf32>
    %377 = vector.multi_reduction <add>, %376, %cst_17 [1] : vector<8x32xf32> to vector<8xf32>
    %378 = vector.shape_cast %377 : vector<8xf32> to vector<8x1xf32>
    %cst_18 = arith.constant 3.200000e+01 : f32
    %379 = vector.broadcast %cst_18 : f32 to vector<8x1xf32>
    %380 = arith.divf %378, %379 : vector<8x1xf32>
    %381 = vector.broadcast %373 : vector<8x1xf32> to vector<8x32xf32>
    %382 = arith.subf %367, %381 : vector<8x32xf32>
    %cst_19 = arith.constant 9.99999974E-6 : f32
    %383 = vector.broadcast %cst_19 : f32 to vector<8x1xf32>
    %384 = arith.addf %380, %383 : vector<8x1xf32>
    %385 = math.rsqrt %384 : vector<8x1xf32>
    %386 = vector.broadcast %385 : vector<8x1xf32> to vector<8x32xf32>
    %387 = arith.mulf %382, %386 : vector<8x32xf32>
    %388 = vector.broadcast %368 : vector<1x32xf32> to vector<8x32xf32>
    %389 = arith.mulf %387, %388 : vector<8x32xf32>
    %390 = vector.broadcast %369 : vector<1x32xf32> to vector<8x32xf32>
    %391 = arith.addf %389, %390 : vector<8x32xf32>
    %c0_20 = arith.constant 0 : index
    %c0_21 = arith.constant 0 : index
    %392 = vector.load %arg8[%c0_20, %c0_21] : memref<32x128xf32, #tpu.memory_space<vmem>>, vector<32x128xf32>
    %cst_22 = arith.constant dense<0.000000e+00> : vector<8x128xf32>
    %393 = tpu.matmul %391, %392, %cst_22 {dimension_numbers = #tpu.dot_dimension_numbers<[1], [0], [0], [1], [0, 0, 1, 1], [], []>} : vector<8x32xf32>, vector<32x128xf32>, vector<8x128xf32> -> vector<8x128xf32>
    %c0_23 = arith.constant 0 : index
    %c0_24 = arith.constant 0 : index
    %394 = vector.load %arg9[%c0_23, %c0_24] : memref<1x128xf32, #tpu.memory_space<vmem>>, vector<1x128xf32>
    %395 = vector.broadcast %394 : vector<1x128xf32> to vector<8x128xf32>
    %396 = arith.addf %393, %395 : vector<8x128xf32>
    %cst_25 = arith.constant 5.000000e-01 : f32
    %397 = vector.broadcast %cst_25 : f32 to vector<8x128xf32>
    %398 = arith.mulf %397, %396 : vector<8x128xf32>
    %cst_26 = arith.constant 0.707106769 : f32
    %399 = vector.broadcast %cst_26 : f32 to vector<8x128xf32>
    %400 = arith.mulf %396, %399 : vector<8x128xf32>
    %401 = math.erf %400 : vector<8x128xf32>
    %cst_27 = arith.constant 1.000000e+00 : f32
    %402 = vector.broadcast %cst_27 : f32 to vector<8x128xf32>
    %403 = arith.addf %402, %401 : vector<8x128xf32>
    %404 = arith.mulf %398, %403 : vector<8x128xf32>
    %c0_28 = arith.constant 0 : index
    %c0_29 = arith.constant 0 : index
    %405 = vector.load %arg10[%c0_28, %c0_29] : memref<128x32xf32, #tpu.memory_space<vmem>>, vector<128x32xf32>
    %cst_30 = arith.constant dense<0.000000e+00> : vector<8x32xf32>
    %406 = tpu.matmul %404, %405, %cst_30 {dimension_numbers = #tpu.dot_dimension_numbers<[1], [0], [0], [1], [0, 0, 1, 1], [], []>} : vector<8x128xf32>, vector<128x32xf32>, vector<8x32xf32> -> vector<8x32xf32>
    %c0_31 = arith.constant 0 : index
    %c0_32 = arith.constant 0 : index
    %407 = vector.load %arg11[%c0_31, %c0_32] : memref<1x32xf32, #tpu.memory_space<vmem>>, vector<1x32xf32>
    %408 = vector.broadcast %407 : vector<1x32xf32> to vector<8x32xf32>
    %409 = arith.addf %406, %408 : vector<8x32xf32>
    %c0_33 = arith.constant 0 : index
    %c0_34 = arith.constant 0 : index
    %410 = vector.load %arg12[%c0_33, %c0_34] : memref<1x32xf32, #tpu.memory_space<vmem>>, vector<1x32xf32>
    %c0_35 = arith.constant 0 : index
    %c0_36 = arith.constant 0 : index
    %c0_37 = arith.constant 0 : index
    %c0_38 = arith.constant 0 : index
    %411 = vector.load %arg3[%c0_35, %c0_36, %c0_37, %c0_38] : memref<1x2x4x32xf32, #tpu.memory_space<vmem>>, vector<1x1x4x32xf32>
    %412 = vector.shape_cast %411 : vector<1x1x4x32xf32> to vector<4x32xf32>
    %413 = vector.extract_strided_slice %409 {offsets = [0, 0], sizes = [4, 32], strides = [1, 1]} : vector<8x32xf32> to vector<4x32xf32>
    %414 = vector.broadcast %410 : vector<1x32xf32> to vector<4x32xf32>
    %415 = arith.mulf %414, %413 : vector<4x32xf32>
    %416 = arith.addf %412, %415 : vector<4x32xf32>
    %c0_39 = arith.constant 0 : index
    %c0_40 = arith.constant 0 : index
    %c0_41 = arith.constant 0 : index
    %c0_42 = arith.constant 0 : index
    %417 = vector.load %arg13[%c0_39, %c0_40, %c0_41, %c0_42] : memref<1x2x4x32xf32, #tpu.memory_space<vmem>>, vector<1x1x4x32xf32>
    %418 = vector.shape_cast %417 : vector<1x1x4x32xf32> to vector<4x32xf32>
    %419 = vector.shape_cast %416 : vector<4x32xf32> to vector<1x1x4x32xf32>
    tpu.vector_store %arg13[%c0_39, %c0_40, %c0_41, %c0_42], %419 {strides = array<i32>} : memref<1x2x4x32xf32, #tpu.memory_space<vmem>>, vector<1x1x4x32xf32>,
    %c0_43 = arith.constant 0 : index
    %c1 = arith.constant 1 : index
    %c0_44 = arith.constant 0 : index
    %c0_45 = arith.constant 0 : index
    %420 = vector.load %arg3[%c0_43, %c1, %c0_44, %c0_45] : memref<1x2x4x32xf32, #tpu.memory_space<vmem>>, vector<1x1x4x32xf32>
    %421 = vector.shape_cast %420 : vector<1x1x4x32xf32> to vector<4x32xf32>
    %422 = vector.extract_strided_slice %409 {offsets = [4, 0], sizes = [4, 32], strides = [1, 1]} : vector<8x32xf32> to vector<4x32xf32>
    %423 = vector.broadcast %410 : vector<1x32xf32> to vector<4x32xf32>
    %424 = arith.mulf %423, %422 : vector<4x32xf32>
    %425 = arith.addf %421, %424 : vector<4x32xf32>
    %c0_46 = arith.constant 0 : index
    %c1_47 = arith.constant 1 : index
    %c0_48 = arith.constant 0 : index
    %c0_49 = arith.constant 0 : index
    %426 = vector.load %arg13[%c0_46, %c1_47, %c0_48, %c0_49] : memref<1x2x4x32xf32, #tpu.memory_space<vmem>>, vector<1x1x4x32xf32>
    %427 = vector.shape_cast %426 : vector<1x1x4x32xf32> to vector<4x32xf32>
    %428 = vector.shape_cast %425 : vector<4x32xf32> to vector<1x1x4x32xf32>
    tpu.vector_store %arg13[%c0_46, %c1_47, %c0_48, %c0_49], %428 {strides = array<i32>} : memref<1x2x4x32xf32, #tpu.memory_space<vmem>>, vector<1x1x4x32xf32>,
    return
  }
  func.func @transform_0(%arg0: i32, %arg1: i32) -> (i32, i32, i32, i32) {
    %c0_i32 = arith.constant 0 : i32
    %c0_i32_0 = arith.constant 0 : i32
    %c0_i32_1 = arith.constant 0 : i32
    %c0_i32_2 = arith.constant 0 : i32
    return %arg0, %c0_i32, %c0_i32_0, %c0_i32_1 : i32, i32, i32, i32
  }
  func.func @transform_1(%arg0: i32, %arg1: i32) -> (i32, i32, i32, i32) {
    %c0_i32 = arith.constant 0 : i32
    %c0_i32_0 = arith.constant 0 : i32
    %c0_i32_1 = arith.constant 0 : i32
    return %arg0, %arg1, %c0_i32, %c0_i32_0 : i32, i32, i32, i32
  }
  func.func @transform_2(%arg0: i32, %arg1: i32) -> (i32, i32) {
    %c0_i32 = arith.constant 0 : i32
    %c0_i32_0 = arith.constant 0 : i32
    %c0_i32_1 = arith.constant 0 : i32
    return %c0_i32, %c0_i32_0 : i32, i32
  }
  func.func @transform_3(%arg0: i32, %arg1: i32) -> (i32, i32) {
    %c0_i32 = arith.constant 0 : i32
    %c0_i32_0 = arith.constant 0 : i32
    %c0_i32_1 = arith.constant 0 : i32
    return %c0_i32, %c0_i32_0 : i32, i32
  }
  func.func @transform_4(%arg0: i32, %arg1: i32) -> (i32, i32) {
    %c0_i32 = arith.constant 0 : i32
    %c0_i32_0 = arith.constant 0 : i32
    %c0_i32_1 = arith.constant 0 : i32
    return %c0_i32, %c0_i32_0 : i32, i32
  }
  func.func @transform_5(%arg0: i32, %arg1: i32) -> (i32, i32) {
    %c0_i32 = arith.constant 0 : i32
    %c0_i32_0 = arith.constant 0 : i32
    %c0_i32_1 = arith.constant 0 : i32
    return %c0_i32, %c0_i32_0 : i32, i32
  }
  func.func @transform_6(%arg0: i32, %arg1: i32) -> (i32, i32) {
    %c0_i32 = arith.constant 0 : i32
    %c0_i32_0 = arith.constant 0 : i32
    %c0_i32_1 = arith.constant 0 : i32
    return %c0_i32, %c0_i32_0 : i32, i32
  }
  func.func @transform_7(%arg0: i32, %arg1: i32) -> (i32, i32) {
    %c0_i32 = arith.constant 0 : i32
    %c0_i32_0 = arith.constant 0 : i32
    %c0_i32_1 = arith.constant 0 : i32
    return %c0_i32, %c0_i32_0 : i32, i32
  }
  func.func @transform_8(%arg0: i32, %arg1: i32) -> (i32, i32) {
    %c0_i32 = arith.constant 0 : i32
    %c0_i32_0 = arith.constant 0 : i32
    %c0_i32_1 = arith.constant 0 : i32
    return %c0_i32, %c0_i32_0 : i32, i32
  }
  func.func @transform_9(%arg0: i32, %arg1: i32) -> (i32, i32) {
    %c0_i32 = arith.constant 0 : i32
    %c0_i32_0 = arith.constant 0 : i32
    %c0_i32_1 = arith.constant 0 : i32
    return %c0_i32, %c0_i32_0 : i32, i32
  }
  func.func @transform_10(%arg0: i32, %arg1: i32) -> (i32, i32) {
    %c0_i32 = arith.constant 0 : i32
    %c0_i32_0 = arith.constant 0 : i32
    %c0_i32_1 = arith.constant 0 : i32
    return %c0_i32, %c0_i32_0 : i32, i32
  }
  func.func @transform_11(%arg0: i32, %arg1: i32) -> (i32, i32, i32, i32) {
    %c0_i32 = arith.constant 0 : i32
    %c0_i32_0 = arith.constant 0 : i32
    %c0_i32_1 = arith.constant 0 : i32
    return %arg0, %arg1, %c0_i32, %c0_i32_0 : i32, i32, i32, i32
  }
}

</mosaic_0001>

<llo_original>
// kernel: tpu_custom_call.1
$region0: #{tpu_custom_call.1}
  #allocation0 [shape = 'u32[]', space=smem, size = 0x4, offset = 0x4, fixed_abs, tag = 'smem constant byte address 0x4 - core index']
  #allocation1 [shape = 'u32[144,128]{1,0:T(1,128)}', space=vmem, size = 0x12000, scoped, tag = 'internal scratch']
  #allocation2 [shape = 'f32[8,32]{1,0:T(8,128)}', space=vmem, size = 0x1000, scoped, tag = 'scratch operand']
  %s0 = inlined_call_operand.vmem [shape: f32[2,14,10,32], index: 0, kind: input, shape index: {}]
  %s1 = inlined_call_operand.vmem [shape: f32[2,8,4,32], index: 1, kind: input, shape index: {}]
  %s2 = inlined_call_operand.vmem [shape: f32[49,32], index: 2, kind: input, shape index: {}]
  %s3 = inlined_call_operand.vmem [shape: f32[1,32], index: 3, kind: input, shape index: {}]
  %s4 = inlined_call_operand.vmem [shape: f32[1,32], index: 4, kind: input, shape index: {}]
  %s5 = inlined_call_operand.vmem [shape: f32[1,32], index: 5, kind: input, shape index: {}]
  %s6 = inlined_call_operand.vmem [shape: f32[32,128], index: 6, kind: input, shape index: {}]
  %s7 = inlined_call_operand.vmem [shape: f32[1,128], index: 7, kind: input, shape index: {}]
  %s8 = inlined_call_operand.vmem [shape: f32[128,32], index: 8, kind: input, shape index: {}]
  %s9 = inlined_call_operand.vmem [shape: f32[1,32], index: 9, kind: input, shape index: {}]
  %s10 = inlined_call_operand.vmem [shape: f32[1,32], index: 10, kind: input, shape index: {}]
  %s11 = inlined_call_operand.hbm [shape: f32[2,8,4,32], index: 11, kind: output, shape index: {}]
  %s12 = sld [smem:[#allocation0]]
  $region77: #{tpu_custom_call.1} parent=0
    _
  %s14 = ssub.s32 1, %s12
  %s15 = scalar_select 0, %s14, %s12
  $region1: #{tpu_custom_call.1} parent=0
    #allocation3 [shape = 'u8[8192]{0}', space=vmem, size = 0x2000, scoped, tag = 'output window, operand 0']
    #allocation4 [shape = 's32[2]{0}', space=sflag, size = 0x8, scoped, tag = 'scoped memory for tpu_custom_call.1']
    %16 = vsyncpa [#allocation4], 0
    %s17 = scalar_lea.sflag [#allocation4], 1
    %18 = vsyncpa %s17, 0
    loop: start=0, step=1, limit=10
    $region2: #{tpu_custom_call.1} parent=1 // loop_pre_header
      _
    $region3: #{tpu_custom_call.1} parent=1 // loop_header
      %s20 = sphi 0, %s24
      %p21 = scmp.ge.s32.totalorder %s20, 10
      %s27 = sphi 0, %s39
      %s28 = sphi 0, %s35
      %s29 = sphi 0, %s27
      %s30 = sphi 0, %s28
      %s31 = sphi 0, %s29
      %s32 = sphi 0, %s30
      %s42 = sphi 0, %s44
      %s45 = sphi 0, %s42
      %s46 = sphi 0, %s45
      %s62 = sphi 0, %s46
      %s70 = sphi 0, %s72
      %s73 = sphi 0, %s70
      %s74 = sphi 0, %s73
      %s90 = sphi 0, %s74
      %s94 = sphi 0, %s94
      %s96 = sphi 0, %s94
      %s97 = sphi 0, %s96
      %s111 = sphi 0, %s97
      %s115 = sphi 0, %s115
      %s117 = sphi 0, %s115
      %s118 = sphi 0, %s117
      %s132 = sphi 0, %s118
      %s136 = sphi 0, %s136
      %s138 = sphi 0, %s136
      %s139 = sphi 0, %s138
      %s153 = sphi 0, %s139
      %s157 = sphi 0, %s157
      %s159 = sphi 0, %s157
      %s160 = sphi 0, %s159
      %s174 = sphi 0, %s160
      %s178 = sphi 0, %s178
      %s180 = sphi 0, %s178
      %s181 = sphi 0, %s180
      %s195 = sphi 0, %s181
      %s199 = sphi 0, %s199
      %s201 = sphi 0, %s199
      %s202 = sphi 0, %s201
      %s216 = sphi 0, %s202
      %s220 = sphi 0, %s220
      %s222 = sphi 0, %s220
      %s223 = sphi 0, %s222
      %s237 = sphi 0, %s223
      %s241 = sphi 0, %s241
      %s243 = sphi 0, %s241
      %s244 = sphi 0, %s243
      %s258 = sphi 0, %s244
      %s262 = sphi 0, %s262
      %s264 = sphi 0, %s262
      %s265 = sphi 0, %s264
      %s279 = sphi 0, %s265
      %s287 = sphi 0, %s289
      %s290 = sphi 0, %s287
      %s291 = sphi 0, %s290
      %s307 = sphi 0, %s291
    $region4: #{tpu_custom_call.1} parent=1 // loop_header_branch
      %23 = sbr.rel (%p21) target = $region8
    $region5: #{tpu_custom_call.1} parent=1 // loop_body
      %s25 = ssub.s32 %s20, 1
      %s26 = ssub.s32 %s20, 2
      %s33 = sadd.s32 1, %s28
      %p34 = scmp.ge.s32.totalorder %s33, 4
      %s35 = scalar_select %p34, 0, %s33
      %s36 = sadd.s32 1, %s27
      %s37 = scalar_select %p34, %s36, %s27
      %p38 = scmp.ge.s32.totalorder %s37, 2
      %s39 = scalar_select %p38, 0, %s37
      %s40 = ssub.s32 %s27, %s39
      %p41 = scmp.eq.s32.totalorder %s40, 0
      %s43 = sadd.s32 %s42, 1
      %s44 = scalar_select %p41, %s42, %s43
      %p47 = pneg %p41
      %p48 = scmp.eq.s32.totalorder %s20, 7
      %p49 = por %p47, %p48
      %p50 = scmp.ne.s32.totalorder %s42, %s45
      %p51 = scmp.eq.s32.totalorder %s20, 0
      %p52 = por %p50, %p51
      %p53 = scmp.ne.s32.totalorder %s42, %s45
      %p54 = scmp.eq.s32.totalorder %s25, 7
      %p55 = por %p53, %p54
      %p56 = scmp.ne.s32.totalorder %s45, %s46
      %p57 = scmp.eq.s32.totalorder %s25, 0
      %p58 = por %p56, %p57
      %p59 = scmp.ne.s32.totalorder %s45, %s46
      %p60 = scmp.eq.s32.totalorder %s26, 7
      %p61 = por %p59, %p60
      %p63 = scmp.ne.s32.totalorder %s46, %s62
      %p64 = scmp.eq.s32.totalorder %s26, 0
      %p65 = por %p63, %p64
      %s66 = ssub.s32 %s27, %s39
      %s67 = ssub.s32 %s28, %s35
      %s68 = sor.u32 %s66, %s67
      %p69 = scmp.eq.s32.totalorder %s68, 0
      %s71 = sadd.s32 %s70, 1
      %s72 = scalar_select %p69, %s70, %s71
      %p75 = pneg %p69
      %p76 = scmp.eq.s32.totalorder %s20, 7
      %p77 = por %p75, %p76
      %p78 = scmp.ne.s32.totalorder %s70, %s73
      %p79 = scmp.eq.s32.totalorder %s20, 0
      %p80 = por %p78, %p79
      %p81 = scmp.ne.s32.totalorder %s70, %s73
      %p82 = scmp.eq.s32.totalorder %s25, 7
      %p83 = por %p81, %p82
      %p84 = scmp.ne.s32.totalorder %s73, %s74
      %p85 = scmp.eq.s32.totalorder %s25, 0
      %p86 = por %p84, %p85
      %p87 = scmp.ne.s32.totalorder %s73, %s74
      %p88 = scmp.eq.s32.totalorder %s26, 7
      %p89 = por %p87, %p88
      %p91 = scmp.ne.s32.totalorder %s74, %s90
      %p92 = scmp.eq.s32.totalorder %s26, 0
      %p93 = por %p91, %p92
      %s95 = sadd.s32 %s94, 1
      %p98 = scmp.eq.s32.totalorder %s20, 7
      %p99 = scmp.ne.s32.totalorder %s94, %s96
      %p100 = scmp.eq.s32.totalorder %s20, 0
      %p101 = por %p99, %p100
      %p102 = scmp.ne.s32.totalorder %s94, %s96
      %p103 = scmp.eq.s32.totalorder %s25, 7
      %p104 = por %p102, %p103
      %p105 = scmp.ne.s32.totalorder %s96, %s97
      %p106 = scmp.eq.s32.totalorder %s25, 0
      %p107 = por %p105, %p106
      %p108 = scmp.ne.s32.totalorder %s96, %s97
      %p109 = scmp.eq.s32.totalorder %s26, 7
      %p110 = por %p108, %p109
      %p112 = scmp.ne.s32.totalorder %s97, %s111
      %p113 = scmp.eq.s32.totalorder %s26, 0
      %p114 = por %p112, %p113
      %s116 = sadd.s32 %s115, 1
      %p119 = scmp.eq.s32.totalorder %s20, 7
      %p120 = scmp.ne.s32.totalorder %s115, %s117
      %p121 = scmp.eq.s32.totalorder %s20, 0
      %p122 = por %p120, %p121
      %p123 = scmp.ne.s32.totalorder %s115, %s117
      %p124 = scmp.eq.s32.totalorder %s25, 7
      %p125 = por %p123, %p124
      %p126 = scmp.ne.s32.totalorder %s117, %s118
      %p127 = scmp.eq.s32.totalorder %s25, 0
      %p128 = por %p126, %p127
      %p129 = scmp.ne.s32.totalorder %s117, %s118
      %p130 = scmp.eq.s32.totalorder %s26, 7
      %p131 = por %p129, %p130
      %p133 = scmp.ne.s32.totalorder %s118, %s132
      %p134 = scmp.eq.s32.totalorder %s26, 0
      %p135 = por %p133, %p134
      %s137 = sadd.s32 %s136, 1
      %p140 = scmp.eq.s32.totalorder %s20, 7
      %p141 = scmp.ne.s32.totalorder %s136, %s138
      %p142 = scmp.eq.s32.totalorder %s20, 0
      %p143 = por %p141, %p142
      %p144 = scmp.ne.s32.totalorder %s136, %s138
      %p145 = scmp.eq.s32.totalorder %s25, 7
      %p146 = por %p144, %p145
      %p147 = scmp.ne.s32.totalorder %s138, %s139
      %p148 = scmp.eq.s32.totalorder %s25, 0
      %p149 = por %p147, %p148
      %p150 = scmp.ne.s32.totalorder %s138, %s139
      %p151 = scmp.eq.s32.totalorder %s26, 7
      %p152 = por %p150, %p151
      %p154 = scmp.ne.s32.totalorder %s139, %s153
      %p155 = scmp.eq.s32.totalorder %s26, 0
      %p156 = por %p154, %p155
      %s158 = sadd.s32 %s157, 1
      %p161 = scmp.eq.s32.totalorder %s20, 7
      %p162 = scmp.ne.s32.totalorder %s157, %s159
      %p163 = scmp.eq.s32.totalorder %s20, 0
      %p164 = por %p162, %p163
      %p165 = scmp.ne.s32.totalorder %s157, %s159
      %p166 = scmp.eq.s32.totalorder %s25, 7
      %p167 = por %p165, %p166
      %p168 = scmp.ne.s32.totalorder %s159, %s160
      %p169 = scmp.eq.s32.totalorder %s25, 0
      %p170 = por %p168, %p169
      %p171 = scmp.ne.s32.totalorder %s159, %s160
      %p172 = scmp.eq.s32.totalorder %s26, 7
      %p173 = por %p171, %p172
      %p175 = scmp.ne.s32.totalorder %s160, %s174
      %p176 = scmp.eq.s32.totalorder %s26, 0
      %p177 = por %p175, %p176
      %s179 = sadd.s32 %s178, 1
      %p182 = scmp.eq.s32.totalorder %s20, 7
      %p183 = scmp.ne.s32.totalorder %s178, %s180
      %p184 = scmp.eq.s32.totalorder %s20, 0
      %p185 = por %p183, %p184
      %p186 = scmp.ne.s32.totalorder %s178, %s180
      %p187 = scmp.eq.s32.totalorder %s25, 7
      %p188 = por %p186, %p187
      %p189 = scmp.ne.s32.totalorder %s180, %s181
      %p190 = scmp.eq.s32.totalorder %s25, 0
      %p191 = por %p189, %p190
      %p192 = scmp.ne.s32.totalorder %s180, %s181
      %p193 = scmp.eq.s32.totalorder %s26, 7
      %p194 = por %p192, %p193
      %p196 = scmp.ne.s32.totalorder %s181, %s195
      %p197 = scmp.eq.s32.totalorder %s26, 0
      %p198 = por %p196, %p197
      %s200 = sadd.s32 %s199, 1
      %p203 = scmp.eq.s32.totalorder %s20, 7
      %p204 = scmp.ne.s32.totalorder %s199, %s201
      %p205 = scmp.eq.s32.totalorder %s20, 0
      %p206 = por %p204, %p205
      %p207 = scmp.ne.s32.totalorder %s199, %s201
      %p208 = scmp.eq.s32.totalorder %s25, 7
      %p209 = por %p207, %p208
      %p210 = scmp.ne.s32.totalorder %s201, %s202
      %p211 = scmp.eq.s32.totalorder %s25, 0
      %p212 = por %p210, %p211
      %p213 = scmp.ne.s32.totalorder %s201, %s202
      %p214 = scmp.eq.s32.totalorder %s26, 7
      %p215 = por %p213, %p214
      %p217 = scmp.ne.s32.totalorder %s202, %s216
      %p218 = scmp.eq.s32.totalorder %s26, 0
      %p219 = por %p217, %p218
      %s221 = sadd.s32 %s220, 1
      %p224 = scmp.eq.s32.totalorder %s20, 7
      %p225 = scmp.ne.s32.totalorder %s220, %s222
      %p226 = scmp.eq.s32.totalorder %s20, 0
      %p227 = por %p225, %p226
      %p228 = scmp.ne.s32.totalorder %s220, %s222
      %p229 = scmp.eq.s32.totalorder %s25, 7
      %p230 = por %p228, %p229
      %p231 = scmp.ne.s32.totalorder %s222, %s223
      %p232 = scmp.eq.s32.totalorder %s25, 0
      %p233 = por %p231, %p232
      %p234 = scmp.ne.s32.totalorder %s222, %s223
      %p235 = scmp.eq.s32.totalorder %s26, 7
      %p236 = por %p234, %p235
      %p238 = scmp.ne.s32.totalorder %s223, %s237
      %p239 = scmp.eq.s32.totalorder %s26, 0
      %p240 = por %p238, %p239
      %s242 = sadd.s32 %s241, 1
      %p245 = scmp.eq.s32.totalorder %s20, 7
      %p246 = scmp.ne.s32.totalorder %s241, %s243
      %p247 = scmp.eq.s32.totalorder %s20, 0
      %p248 = por %p246, %p247
      %p249 = scmp.ne.s32.totalorder %s241, %s243
      %p250 = scmp.eq.s32.totalorder %s25, 7
      %p251 = por %p249, %p250
      %p252 = scmp.ne.s32.totalorder %s243, %s244
      %p253 = scmp.eq.s32.totalorder %s25, 0
      %p254 = por %p252, %p253
      %p255 = scmp.ne.s32.totalorder %s243, %s244
      %p256 = scmp.eq.s32.totalorder %s26, 7
      %p257 = por %p255, %p256
      %p259 = scmp.ne.s32.totalorder %s244, %s258
      %p260 = scmp.eq.s32.totalorder %s26, 0
      %p261 = por %p259, %p260
      %s263 = sadd.s32 %s262, 1
      %p266 = scmp.eq.s32.totalorder %s20, 7
      %p267 = scmp.ne.s32.totalorder %s262, %s264
      %p268 = scmp.eq.s32.totalorder %s20, 0
      %p269 = por %p267, %p268
      %p270 = scmp.ne.s32.totalorder %s262, %s264
      %p271 = scmp.eq.s32.totalorder %s25, 7
      %p272 = por %p270, %p271
      %p273 = scmp.ne.s32.totalorder %s264, %s265
      %p274 = scmp.eq.s32.totalorder %s25, 0
      %p275 = por %p273, %p274
      %p276 = scmp.ne.s32.totalorder %s264, %s265
      %p277 = scmp.eq.s32.totalorder %s26, 7
      %p278 = por %p276, %p277
      %p280 = scmp.ne.s32.totalorder %s265, %s279
      %p281 = scmp.eq.s32.totalorder %s26, 0
      %p282 = por %p280, %p281
      %s283 = ssub.s32 %s27, %s39
      %s284 = ssub.s32 %s28, %s35
      %s285 = sor.u32 %s283, %s284
      %p286 = scmp.eq.s32.totalorder %s285, 0
      %s288 = sadd.s32 %s287, 1
      %s289 = scalar_select %p286, %s287, %s288
      %p292 = pneg %p286
      %p293 = scmp.eq.s32.totalorder %s20, 7
      %p294 = por %p292, %p293
      %p295 = scmp.ne.s32.totalorder %s287, %s290
      %p296 = scmp.eq.s32.totalorder %s20, 0
      %p297 = por %p295, %p296
      %p298 = scmp.ne.s32.totalorder %s287, %s290
      %p299 = scmp.eq.s32.totalorder %s25, 7
      %p300 = por %p298, %p299
      %p301 = scmp.ne.s32.totalorder %s290, %s291
      %p302 = scmp.eq.s32.totalorder %s25, 0
      %p303 = por %p301, %p302
      %p304 = scmp.ne.s32.totalorder %s290, %s291
      %p305 = scmp.eq.s32.totalorder %s26, 7
      %p306 = por %p304, %p305
      %p308 = scmp.ne.s32.totalorder %s291, %s307
      %p309 = scmp.eq.s32.totalorder %s26, 0
      %p310 = por %p308, %p309
      %p311 = scmp.le.s32.totalorder 1, %s20
      %p312 = scmp.lt.s32.totalorder %s20, 9
      %p313 = pnand %p311, %p312
      %p314 = pneg %p313
      // Predicated region
      $region9: #{tpu_custom_call.1} parent=5 // pred_check
        _
      $region10: #{tpu_custom_call.1} parent=5 // pred_check_branch
        %316 = sbr.rel (%p313) target = $region12
      $region11: #{tpu_custom_call.1} parent=5 // pred_region
        %s317 = ssub.s32 %s20, 1
        // Predicated region
        $region13: #{tpu_custom_call.1} parent=11 // pred_check
          %p318 = pneg %p107
        $region14: #{tpu_custom_call.1} parent=11 // pred_check_branch
          %320 = sbr.rel (%p318) target = $region16
        $region15: #{tpu_custom_call.1} parent=11 // pred_region
          _
        $region16: #{tpu_custom_call.1} parent=11 // pred_fallthru
          _
        // Predicated region
        $region17: #{tpu_custom_call.1} parent=11 // pred_check
          %p321 = pneg %p128
        $region18: #{tpu_custom_call.1} parent=11 // pred_check_branch
          %323 = sbr.rel (%p321) target = $region20
        $region19: #{tpu_custom_call.1} parent=11 // pred_region
          _
        $region20: #{tpu_custom_call.1} parent=11 // pred_fallthru
          _
        // Predicated region
        $region21: #{tpu_custom_call.1} parent=11 // pred_check
          %p324 = pneg %p149
        $region22: #{tpu_custom_call.1} parent=11 // pred_check_branch
          %326 = sbr.rel (%p324) target = $region24
        $region23: #{tpu_custom_call.1} parent=11 // pred_region
          _
        $region24: #{tpu_custom_call.1} parent=11 // pred_fallthru
          _
        // Predicated region
        $region25: #{tpu_custom_call.1} parent=11 // pred_check
          %p327 = pneg %p170
        $region26: #{tpu_custom_call.1} parent=11 // pred_check_branch
          %329 = sbr.rel (%p327) target = $region28
        $region27: #{tpu_custom_call.1} parent=11 // pred_region
          _
        $region28: #{tpu_custom_call.1} parent=11 // pred_fallthru
          _
        // Predicated region
        $region29: #{tpu_custom_call.1} parent=11 // pred_check
          %p330 = pneg %p191
        $region30: #{tpu_custom_call.1} parent=11 // pred_check_branch
          %332 = sbr.rel (%p330) target = $region32
        $region31: #{tpu_custom_call.1} parent=11 // pred_region
          _
        $region32: #{tpu_custom_call.1} parent=11 // pred_fallthru
          _
        // Predicated region
        $region33: #{tpu_custom_call.1} parent=11 // pred_check
          %p333 = pneg %p212
        $region34: #{tpu_custom_call.1} parent=11 // pred_check_branch
          %335 = sbr.rel (%p333) target = $region36
        $region35: #{tpu_custom_call.1} parent=11 // pred_region
          _
        $region36: #{tpu_custom_call.1} parent=11 // pred_fallthru
          _
        // Predicated region
        $region37: #{tpu_custom_call.1} parent=11 // pred_check
          %p336 = pneg %p233
        $region38: #{tpu_custom_call.1} parent=11 // pred_check_branch
          %338 = sbr.rel (%p336) target = $region40
        $region39: #{tpu_custom_call.1} parent=11 // pred_region
          _
        $region40: #{tpu_custom_call.1} parent=11 // pred_fallthru
          _
        // Predicated region
        $region41: #{tpu_custom_call.1} parent=11 // pred_check
          %p339 = pneg %p254
        $region42: #{tpu_custom_call.1} parent=11 // pred_check_branch
          %341 = sbr.rel (%p339) target = $region44
        $region43: #{tpu_custom_call.1} parent=11 // pred_region
          _
        $region44: #{tpu_custom_call.1} parent=11 // pred_fallthru
          _
        // Predicated region
        $region45: #{tpu_custom_call.1} parent=11 // pred_check
          %p342 = pneg %p275
        $region46: #{tpu_custom_call.1} parent=11 // pred_check_branch
          %344 = sbr.rel (%p342) target = $region48
        $region47: #{tpu_custom_call.1} parent=11 // pred_region
          _
        $region48: #{tpu_custom_call.1} parent=11 // pred_fallthru
          _
      $region12: #{tpu_custom_call.1} parent=5 // pred_fallthru
        _
      %p345 = scmp.lt.s32.totalorder %s20, 8
      // Predicated region
      $region49: #{tpu_custom_call.1} parent=5 // pred_check
        %p346 = pneg %p345
      $region50: #{tpu_custom_call.1} parent=5 // pred_check_branch
        %348 = sbr.rel (%p346) target = $region52
      $region51: #{tpu_custom_call.1} parent=5 // pred_region
        // Predicated region
        $region53: #{tpu_custom_call.1} parent=51 // pred_check
          %p349 = pneg %p52
        $region54: #{tpu_custom_call.1} parent=51 // pred_check_branch
          %351 = sbr.rel (%p349) target = $region56
        $region55: #{tpu_custom_call.1} parent=51 // pred_region
          %p352 = scmp.lt.s32.totalorder %s27, 1
          %s353 = scalar_select %p352, %s27, 1
          %s354 = smul.addr %s353, 28
          %s355 = smul.addr %s354, 8
          %s356 = scalar_lea.vmem %s0, %s355
        $region56: #{tpu_custom_call.1} parent=51 // pred_fallthru
          _
        // Predicated region
        $region57: #{tpu_custom_call.1} parent=51 // pred_check
          %p357 = pneg %p80
        $region58: #{tpu_custom_call.1} parent=51 // pred_check_branch
          %359 = sbr.rel (%p357) target = $region60
        $region59: #{tpu_custom_call.1} parent=51 // pred_region
          %s360 = smul.u32 2, %s28
          %p361 = scmp.lt.s32.totalorder %s27, 1
          %s362 = scalar_select %p361, %s27, 1
          %p363 = scmp.lt.s32.totalorder %s360, 7
          %s364 = scalar_select %p363, %s360, 7
          %s365 = smul.addr %s362, 8
          %s366 = sadd.s32 %s364, %s365
          %s367 = smul.addr %s366, 4
          %s368 = scalar_lea.vmem %s1, %s367
          %s369 = smul.u32 2, %s28
        $region60: #{tpu_custom_call.1} parent=51 // pred_fallthru
          _
      $region52: #{tpu_custom_call.1} parent=5 // pred_fallthru
        _
      %p370 = scmp.le.s32.totalorder 1, %s20
      %p371 = scmp.lt.s32.totalorder %s20, 9
      %p372 = pnand %p370, %p371
      %p373 = pneg %p372
      // Predicated region
      $region61: #{tpu_custom_call.1} parent=5 // pred_check
        _
      $region62: #{tpu_custom_call.1} parent=5 // pred_check_branch
        %375 = sbr.rel (%p372) target = $region64
      $region63: #{tpu_custom_call.1} parent=5 // pred_region
        %s376 = ssub.s32 %s20, 1
        %p377 = scmp.lt.s32.totalorder %s29, 1
        %s378 = scalar_select %p377, %s29, 1
        %s379 = smul.addr %s378, 28
        %s380 = smul.addr %s379, 8
        %s381 = scalar_lea.vmem %s0, %s380
        %p382 = pneg %p58
        %p383 = pneg %p55
        %s384 = smul.u32 2, %s30
        %p385 = scmp.lt.s32.totalorder %s29, 1
        %s386 = scalar_select %p385, %s29, 1
        %p387 = scmp.lt.s32.totalorder %s384, 7
        %s388 = scalar_select %p387, %s384, 7
        %s389 = smul.addr %s386, 8
        %s390 = sadd.s32 %s388, %s389
        %s391 = smul.addr %s390, 4
        %s392 = scalar_lea.vmem %s1, %s391
        %p393 = pneg %p86
        %p394 = pneg %p83
        %p395 = pneg %p107
        %p396 = pneg %p104
        %p397 = pneg %p128
        %p398 = pneg %p125
        %p399 = pneg %p149
        %p400 = pneg %p146
        %p401 = pneg %p170
        %p402 = pneg %p167
        %p403 = pneg %p191
        %p404 = pneg %p188
        %p405 = pneg %p212
        %p406 = pneg %p209
        %p407 = pneg %p233
        %p408 = pneg %p230
        %p409 = pneg %p254
        %p410 = pneg %p251
        %p411 = pneg %p275
        %p412 = pneg %p272
        %p413 = pneg %p303
        %p414 = pneg %p300
        %s415 = sand.u32 %s290, 1
        %s416 = scalar_lea.sflag [#allocation4], %s415
        %s417 = sand.u32 %s290, 1
        %s418 = smul.addr %s417, 8
        %s419 = scalar_lea.vmem [#allocation3], %s418
        %p420 = scmp.lt.s32.totalorder %s29, 1
        %s421 = scalar_select %p420, %s29, 1
        %s422 = smul.addr %s421, 28
        %s423 = smul.addr %s422, 8
        %s424 = scalar_lea.vmem %s0, %s423
        %s425 = smul.u32 2, %s30
        %p426 = scmp.lt.s32.totalorder %s29, 1
        %s427 = scalar_select %p426, %s29, 1
        %p428 = scmp.lt.s32.totalorder %s425, 7
        %s429 = scalar_select %p428, %s425, 7
        %s430 = smul.addr %s427, 8
        %s431 = sadd.s32 %s429, %s430
        %s432 = smul.addr %s431, 4
        %s433 = scalar_lea.vmem %s1, %s432
        %s434 = smul.u32 2, %s30
        %s435 = smul.u32 2, %s30
        %s436 = smul.u32 %s30, 2
        %s437 = smul.u32 %s436, 16
        %s438 = scalar_lea.vmem %s424, %s437
        %v439 = vld [vmem:[%s438] sm:$0xff]
        %v440 = vld [vmem:[%s438 + $0x8] sm:$0x3]
        %v441 = vld [vmem:[%s438 + $0x10] sm:$0xff]
        %v442 = vld [vmem:[%s438 + $0x18] sm:$0x3]
        %v443 = vld [vmem:[%s438 + $0x20] sm:$0xff]
        %v444 = vld [vmem:[%s438 + $0x28] sm:$0x3]
        %v445 = vld [vmem:[%s438 + $0x30] sm:$0xff]
        %v446 = vld [vmem:[%s438 + $0x38] sm:$0x3]
        %v447 = vld [vmem:[%s438 + $0x40] sm:$0xff]
        %v448 = vld [vmem:[%s438 + $0x48] sm:$0x3]
        %v449 = vld [vmem:[%s438 + $0x50] sm:$0xff]
        %v450 = vld [vmem:[%s438 + $0x58] sm:$0x3]
        %v451 = vld [vmem:[%s438 + $0x60] sm:$0xff]
        %v452 = vld [vmem:[%s438 + $0x68] sm:$0x3]
        %v453 = vld [vmem:[%s438 + $0x70] sm:$0xff]
        %v454 = vld [vmem:[%s438 + $0x78] sm:$0x3]
        %v455 = vld [vmem:[%s2] sm:$0xff]
        %v456 = vld [vmem:[%s2 + $0x8] sm:$0xff]
        %v457 = vld [vmem:[%s2 + $0x10] sm:$0xff]
        %v458 = vld [vmem:[%s2 + $0x18] sm:$0xff]
        %v459 = vld [vmem:[%s2 + $0x20] sm:$0xff]
        %v460 = vld [vmem:[%s2 + $0x28] sm:$0xff]
        %v461 = vld [vmem:[%s2 + $0x30] sm:$0x1]
        %v462 = vlaneseq
        %v463 = vshrl.u32 %v462, 7
        %v464 = vsub.s32 0, %v463
        %v465 = vrot.slane %v455, %v464
        %v466 = vmul.f32 %v439, %v465
        %v467 = vmul.f32 %v441, %v465
        %v468 = vadd.f32 %v466, 0.0
        %v469 = vadd.f32 %v467, 0.0
        %v470 = vlaneseq
        %v471 = vshrl.u32 %v470, 7
        %v472 = vsub.s32 7, %v471
        %v473 = vrot.slane %v455, %v472
        %v474 = vmul.f32 %v441, %v473
        %v475 = vmul.f32 %v443, %v473
        %v476 = vadd.f32 %v468, %v474
        %v477 = vadd.f32 %v469, %v475
        %v478 = vlaneseq
        %v479 = vshrl.u32 %v478, 7
        %v480 = vsub.s32 6, %v479
        %v481 = vrot.slane %v456, %v480
        %v482 = vmul.f32 %v443, %v481
        %v483 = vmul.f32 %v445, %v481
        %v484 = vadd.f32 %v476, %v482
        %v485 = vadd.f32 %v477, %v483
        %v486 = vlaneseq
        %v487 = vshrl.u32 %v486, 7
        %v488 = vsub.s32 5, %v487
        %v489 = vrot.slane %v457, %v488
        %v490 = vmul.f32 %v445, %v489
        %v491 = vmul.f32 %v447, %v489
        %v492 = vadd.f32 %v484, %v490
        %v493 = vadd.f32 %v485, %v491
        %v494 = vlaneseq
        %v495 = vshrl.u32 %v494, 7
        %v496 = vsub.s32 4, %v495
        %v497 = vrot.slane %v458, %v496
        %v498 = vmul.f32 %v447, %v497
        %v499 = vmul.f32 %v449, %v497
        %v500 = vadd.f32 %v492, %v498
        %v501 = vadd.f32 %v493, %v499
        %v502 = vlaneseq
        %v503 = vshrl.u32 %v502, 7
        %v504 = vsub.s32 3, %v503
        %v505 = vrot.slane %v459, %v504
        %v506 = vmul.f32 %v449, %v505
        %v507 = vmul.f32 %v451, %v505
        %v508 = vadd.f32 %v500, %v506
        %v509 = vadd.f32 %v501, %v507
        %v510 = vlaneseq
        %v511 = vshrl.u32 %v510, 7
        %v512 = vsub.s32 2, %v511
        %v513 = vrot.slane %v460, %v512
        %v514 = vmul.f32 %v451, %v513
        %v515 = vmul.f32 %v453, %v513
        %v516 = vadd.f32 %v508, %v514
        %v517 = vadd.f32 %v509, %v515
        %v518 = vlaneseq
        %v519 = vshrl.u32 %v518, 7
        %v520 = vsub.s32 1, %v519
        %v521 = vrot.slane %v455, %v520
        %v522 = vmul.f32 %v439, %v521
        %v523 = vmul.f32 %v441, %v521
        %v526 = vrot.slane %v522, 1
        %v527 = vrot.slane %v523, 1
        %v530 = vadd.f32 %v516, %v526
        %v531 = vadd.f32 %v517, %v527
        %v532 = vlaneseq
        %v533 = vshrl.u32 %v532, 7
        %v534 = vsub.s32 0, %v533
        %v535 = vrot.slane %v456, %v534
        %v536 = vmul.f32 %v441, %v535
        %v537 = vmul.f32 %v443, %v535
        %v540 = vrot.slane %v536, 1
        %v541 = vrot.slane %v537, 1
        %v544 = vadd.f32 %v530, %v540
        %v545 = vadd.f32 %v531, %v541
        %v546 = vlaneseq
        %v547 = vshrl.u32 %v546, 7
        %v548 = vsub.s32 7, %v547
        %v549 = vrot.slane %v456, %v548
        %v550 = vmul.f32 %v443, %v549
        %v551 = vmul.f32 %v445, %v549
        %v554 = vrot.slane %v550, 1
        %v555 = vrot.slane %v551, 1
        %v558 = vadd.f32 %v544, %v554
        %v559 = vadd.f32 %v545, %v555
        %v560 = vlaneseq
        %v561 = vshrl.u32 %v560, 7
        %v562 = vsub.s32 6, %v561
        %v563 = vrot.slane %v457, %v562
        %v564 = vmul.f32 %v445, %v563
        %v565 = vmul.f32 %v447, %v563
        %v568 = vrot.slane %v564, 1
        %v569 = vrot.slane %v565, 1
        %v572 = vadd.f32 %v558, %v568
        %v573 = vadd.f32 %v559, %v569
        %v574 = vlaneseq
        %v575 = vshrl.u32 %v574, 7
        %v576 = vsub.s32 5, %v575
        %v577 = vrot.slane %v458, %v576
        %v578 = vmul.f32 %v447, %v577
        %v579 = vmul.f32 %v449, %v577
        %v582 = vrot.slane %v578, 1
        %v583 = vrot.slane %v579, 1
        %v586 = vadd.f32 %v572, %v582
        %v587 = vadd.f32 %v573, %v583
        %v588 = vlaneseq
        %v589 = vshrl.u32 %v588, 7
        %v590 = vsub.s32 4, %v589
        %v591 = vrot.slane %v459, %v590
        %v592 = vmul.f32 %v449, %v591
        %v593 = vmul.f32 %v451, %v591
        %v596 = vrot.slane %v592, 1
        %v597 = vrot.slane %v593, 1
        %v600 = vadd.f32 %v586, %v596
        %v601 = vadd.f32 %v587, %v597
        %v602 = vlaneseq
        %v603 = vshrl.u32 %v602, 7
        %v604 = vsub.s32 3, %v603
        %v605 = vrot.slane %v460, %v604
        %v606 = vmul.f32 %v451, %v605
        %v607 = vmul.f32 %v453, %v605
        %v610 = vrot.slane %v606, 1
        %v611 = vrot.slane %v607, 1
        %v614 = vadd.f32 %v600, %v610
        %v615 = vadd.f32 %v601, %v611
        %v616 = vlaneseq
        %v617 = vshrl.u32 %v616, 7
        %v618 = vsub.s32 2, %v617
        %v619 = vrot.slane %v455, %v618
        %v620 = vmul.f32 %v439, %v619
        %v621 = vmul.f32 %v441, %v619
        %v624 = vrot.slane %v620, 2
        %v625 = vrot.slane %v621, 2
        %v628 = vadd.f32 %v614, %v624
        %v629 = vadd.f32 %v615, %v625
        %v630 = vlaneseq
        %v631 = vshrl.u32 %v630, 7
        %v632 = vsub.s32 1, %v631
        %v633 = vrot.slane %v456, %v632
        %v634 = vmul.f32 %v441, %v633
        %v635 = vmul.f32 %v443, %v633
        %v638 = vrot.slane %v634, 2
        %v639 = vrot.slane %v635, 2
        %v642 = vadd.f32 %v628, %v638
        %v643 = vadd.f32 %v629, %v639
        %v644 = vlaneseq
        %v645 = vshrl.u32 %v644, 7
        %v646 = vsub.s32 0, %v645
        %v647 = vrot.slane %v457, %v646
        %v648 = vmul.f32 %v443, %v647
        %v649 = vmul.f32 %v445, %v647
        %v652 = vrot.slane %v648, 2
        %v653 = vrot.slane %v649, 2
        %v656 = vadd.f32 %v642, %v652
        %v657 = vadd.f32 %v643, %v653
        %v658 = vlaneseq
        %v659 = vshrl.u32 %v658, 7
        %v660 = vsub.s32 7, %v659
        %v661 = vrot.slane %v457, %v660
        %v662 = vmul.f32 %v445, %v661
        %v663 = vmul.f32 %v447, %v661
        %v666 = vrot.slane %v662, 2
        %v667 = vrot.slane %v663, 2
        %v670 = vadd.f32 %v656, %v666
        %v671 = vadd.f32 %v657, %v667
        %v672 = vlaneseq
        %v673 = vshrl.u32 %v672, 7
        %v674 = vsub.s32 6, %v673
        %v675 = vrot.slane %v458, %v674
        %v676 = vmul.f32 %v447, %v675
        %v677 = vmul.f32 %v449, %v675
        %v680 = vrot.slane %v676, 2
        %v681 = vrot.slane %v677, 2
        %v684 = vadd.f32 %v670, %v680
        %v685 = vadd.f32 %v671, %v681
        %v686 = vlaneseq
        %v687 = vshrl.u32 %v686, 7
        %v688 = vsub.s32 5, %v687
        %v689 = vrot.slane %v459, %v688
        %v690 = vmul.f32 %v449, %v689
        %v691 = vmul.f32 %v451, %v689
        %v694 = vrot.slane %v690, 2
        %v695 = vrot.slane %v691, 2
        %v698 = vadd.f32 %v684, %v694
        %v699 = vadd.f32 %v685, %v695
        %v700 = vlaneseq
        %v701 = vshrl.u32 %v700, 7
        %v702 = vsub.s32 4, %v701
        %v703 = vrot.slane %v460, %v702
        %v704 = vmul.f32 %v451, %v703
        %v705 = vmul.f32 %v453, %v703
        %v708 = vrot.slane %v704, 2
        %v709 = vrot.slane %v705, 2
        %v712 = vadd.f32 %v698, %v708
        %v713 = vadd.f32 %v699, %v709
        %v714 = vlaneseq
        %v715 = vshrl.u32 %v714, 7
        %v716 = vsub.s32 3, %v715
        %v717 = vrot.slane %v455, %v716
        %v718 = vmul.f32 %v439, %v717
        %v719 = vmul.f32 %v441, %v717
        %v722 = vrot.slane %v718, 3
        %v723 = vrot.slane %v719, 3
        %v726 = vadd.f32 %v712, %v722
        %v727 = vadd.f32 %v713, %v723
        %v728 = vlaneseq
        %v729 = vshrl.u32 %v728, 7
        %v730 = vsub.s32 2, %v729
        %v731 = vrot.slane %v456, %v730
        %v732 = vmul.f32 %v441, %v731
        %v733 = vmul.f32 %v443, %v731
        %v736 = vrot.slane %v732, 3
        %v737 = vrot.slane %v733, 3
        %v740 = vadd.f32 %v726, %v736
        %v741 = vadd.f32 %v727, %v737
        %v742 = vlaneseq
        %v743 = vshrl.u32 %v742, 7
        %v744 = vsub.s32 1, %v743
        %v745 = vrot.slane %v457, %v744
        %v746 = vmul.f32 %v443, %v745
        %v747 = vmul.f32 %v445, %v745
        %v750 = vrot.slane %v746, 3
        %v751 = vrot.slane %v747, 3
        %v754 = vadd.f32 %v740, %v750
        %v755 = vadd.f32 %v741, %v751
        %v756 = vlaneseq
        %v757 = vshrl.u32 %v756, 7
        %v758 = vsub.s32 0, %v757
        %v759 = vrot.slane %v458, %v758
        %v760 = vmul.f32 %v445, %v759
        %v761 = vmul.f32 %v447, %v759
        %v764 = vrot.slane %v760, 3
        %v765 = vrot.slane %v761, 3
        %v768 = vadd.f32 %v754, %v764
        %v769 = vadd.f32 %v755, %v765
        %v770 = vlaneseq
        %v771 = vshrl.u32 %v770, 7
        %v772 = vsub.s32 7, %v771
        %v773 = vrot.slane %v458, %v772
        %v774 = vmul.f32 %v447, %v773
        %v775 = vmul.f32 %v449, %v773
        %v778 = vrot.slane %v774, 3
        %v779 = vrot.slane %v775, 3
        %v782 = vadd.f32 %v768, %v778
        %v783 = vadd.f32 %v769, %v779
        %v784 = vlaneseq
        %v785 = vshrl.u32 %v784, 7
        %v786 = vsub.s32 6, %v785
        %v787 = vrot.slane %v459, %v786
        %v788 = vmul.f32 %v449, %v787
        %v789 = vmul.f32 %v451, %v787
        %v792 = vrot.slane %v788, 3
        %v793 = vrot.slane %v789, 3
        %v796 = vadd.f32 %v782, %v792
        %v797 = vadd.f32 %v783, %v793
        %v798 = vlaneseq
        %v799 = vshrl.u32 %v798, 7
        %v800 = vsub.s32 5, %v799
        %v801 = vrot.slane %v460, %v800
        %v802 = vmul.f32 %v451, %v801
        %v803 = vmul.f32 %v453, %v801
        %v806 = vrot.slane %v802, 3
        %v807 = vrot.slane %v803, 3
        %v810 = vadd.f32 %v796, %v806
        %v811 = vadd.f32 %v797, %v807
        %v812 = vlaneseq
        %v813 = vshrl.u32 %v812, 7
        %v814 = vsub.s32 4, %v813
        %v815 = vrot.slane %v455, %v814
        %v816 = vmul.f32 %v439, %v815
        %v817 = vmul.f32 %v441, %v815
        %v820 = vrot.slane %v816, 4
        %v821 = vrot.slane %v817, 4
        %v824 = vadd.f32 %v810, %v820
        %v825 = vadd.f32 %v811, %v821
        %v826 = vlaneseq
        %v827 = vshrl.u32 %v826, 7
        %v828 = vsub.s32 3, %v827
        %v829 = vrot.slane %v456, %v828
        %v830 = vmul.f32 %v441, %v829
        %v831 = vmul.f32 %v443, %v829
        %v834 = vrot.slane %v830, 4
        %v835 = vrot.slane %v831, 4
        %v838 = vadd.f32 %v824, %v834
        %v839 = vadd.f32 %v825, %v835
        %v840 = vlaneseq
        %v841 = vshrl.u32 %v840, 7
        %v842 = vsub.s32 2, %v841
        %v843 = vrot.slane %v457, %v842
        %v844 = vmul.f32 %v443, %v843
        %v845 = vmul.f32 %v445, %v843
        %v848 = vrot.slane %v844, 4
        %v849 = vrot.slane %v845, 4
        %v852 = vadd.f32 %v838, %v848
        %v853 = vadd.f32 %v839, %v849
        %v854 = vlaneseq
        %v855 = vshrl.u32 %v854, 7
        %v856 = vsub.s32 1, %v855
        %v857 = vrot.slane %v458, %v856
        %v858 = vmul.f32 %v445, %v857
        %v859 = vmul.f32 %v447, %v857
        %v862 = vrot.slane %v858, 4
        %v863 = vrot.slane %v859, 4
        %v866 = vadd.f32 %v852, %v862
        %v867 = vadd.f32 %v853, %v863
        %v868 = vlaneseq
        %v869 = vshrl.u32 %v868, 7
        %v870 = vsub.s32 0, %v869
        %v871 = vrot.slane %v459, %v870
        %v872 = vmul.f32 %v447, %v871
        %v873 = vmul.f32 %v449, %v871
        %v876 = vrot.slane %v872, 4
        %v877 = vrot.slane %v873, 4
        %v880 = vadd.f32 %v866, %v876
        %v881 = vadd.f32 %v867, %v877
        %v882 = vlaneseq
        %v883 = vshrl.u32 %v882, 7
        %v884 = vsub.s32 7, %v883
        %v885 = vrot.slane %v459, %v884
        %v886 = vmul.f32 %v449, %v885
        %v887 = vmul.f32 %v451, %v885
        %v890 = vrot.slane %v886, 4
        %v891 = vrot.slane %v887, 4
        %v894 = vadd.f32 %v880, %v890
        %v895 = vadd.f32 %v881, %v891
        %v896 = vlaneseq
        %v897 = vshrl.u32 %v896, 7
        %v898 = vsub.s32 6, %v897
        %v899 = vrot.slane %v460, %v898
        %v900 = vmul.f32 %v451, %v899
        %v901 = vmul.f32 %v453, %v899
        %v904 = vrot.slane %v900, 4
        %v905 = vrot.slane %v901, 4
        %v908 = vadd.f32 %v894, %v904
        %v909 = vadd.f32 %v895, %v905
        %v910 = vlaneseq
        %v911 = vshrl.u32 %v910, 7
        %v912 = vsub.s32 5, %v911
        %v913 = vrot.slane %v455, %v912
        %v914 = vmul.f32 %v439, %v913
        %v915 = vmul.f32 %v440, %v913
        %v916 = vmul.f32 %v441, %v913
        %v917 = vmul.f32 %v442, %v913
        %vm922 = vcmask 1042432
        %v923 = vrot.slane %v914, 5
        %v924 = vrot.slane %v915, 5
        %v925 = vsel %vm922, %v923, %v924
        %v926 = vrot.slane %v916, 5
        %v927 = vrot.slane %v917, 5
        %v928 = vsel %vm922, %v926, %v927
        %v931 = vadd.f32 %v908, %v925
        %v932 = vadd.f32 %v909, %v928
        %v933 = vlaneseq
        %v934 = vshrl.u32 %v933, 7
        %v935 = vsub.s32 4, %v934
        %v936 = vrot.slane %v456, %v935
        %v937 = vmul.f32 %v441, %v936
        %v938 = vmul.f32 %v442, %v936
        %v939 = vmul.f32 %v443, %v936
        %v940 = vmul.f32 %v444, %v936
        %v945 = vrot.slane %v937, 5
        %v946 = vrot.slane %v938, 5
        %v947 = vsel %vm922, %v945, %v946
        %v948 = vrot.slane %v939, 5
        %v949 = vrot.slane %v940, 5
        %v950 = vsel %vm922, %v948, %v949
        %v953 = vadd.f32 %v931, %v947
        %v954 = vadd.f32 %v932, %v950
        %v955 = vlaneseq
        %v956 = vshrl.u32 %v955, 7
        %v957 = vsub.s32 3, %v956
        %v958 = vrot.slane %v457, %v957
        %v959 = vmul.f32 %v443, %v958
        %v960 = vmul.f32 %v444, %v958
        %v961 = vmul.f32 %v445, %v958
        %v962 = vmul.f32 %v446, %v958
        %v967 = vrot.slane %v959, 5
        %v968 = vrot.slane %v960, 5
        %v969 = vsel %vm922, %v967, %v968
        %v970 = vrot.slane %v961, 5
        %v971 = vrot.slane %v962, 5
        %v972 = vsel %vm922, %v970, %v971
        %v975 = vadd.f32 %v953, %v969
        %v976 = vadd.f32 %v954, %v972
        %v977 = vlaneseq
        %v978 = vshrl.u32 %v977, 7
        %v979 = vsub.s32 2, %v978
        %v980 = vrot.slane %v458, %v979
        %v981 = vmul.f32 %v445, %v980
        %v982 = vmul.f32 %v446, %v980
        %v983 = vmul.f32 %v447, %v980
        %v984 = vmul.f32 %v448, %v980
        %v989 = vrot.slane %v981, 5
        %v990 = vrot.slane %v982, 5
        %v991 = vsel %vm922, %v989, %v990
        %v992 = vrot.slane %v983, 5
        %v993 = vrot.slane %v984, 5
        %v994 = vsel %vm922, %v992, %v993
        %v997 = vadd.f32 %v975, %v991
        %v998 = vadd.f32 %v976, %v994
        %v999 = vlaneseq
        %v1000 = vshrl.u32 %v999, 7
        %v1001 = vsub.s32 1, %v1000
        %v1002 = vrot.slane %v459, %v1001
        %v1003 = vmul.f32 %v447, %v1002
        %v1004 = vmul.f32 %v448, %v1002
        %v1005 = vmul.f32 %v449, %v1002
        %v1006 = vmul.f32 %v450, %v1002
        %v1011 = vrot.slane %v1003, 5
        %v1012 = vrot.slane %v1004, 5
        %v1013 = vsel %vm922, %v1011, %v1012
        %v1014 = vrot.slane %v1005, 5
        %v1015 = vrot.slane %v1006, 5
        %v1016 = vsel %vm922, %v1014, %v1015
        %v1019 = vadd.f32 %v997, %v1013
        %v1020 = vadd.f32 %v998, %v1016
        %v1021 = vlaneseq
        %v1022 = vshrl.u32 %v1021, 7
        %v1023 = vsub.s32 0, %v1022
        %v1024 = vrot.slane %v460, %v1023
        %v1025 = vmul.f32 %v449, %v1024
        %v1026 = vmul.f32 %v450, %v1024
        %v1027 = vmul.f32 %v451, %v1024
        %v1028 = vmul.f32 %v452, %v1024
        %v1033 = vrot.slane %v1025, 5
        %v1034 = vrot.slane %v1026, 5
        %v1035 = vsel %vm922, %v1033, %v1034
        %v1036 = vrot.slane %v1027, 5
        %v1037 = vrot.slane %v1028, 5
        %v1038 = vsel %vm922, %v1036, %v1037
        %v1041 = vadd.f32 %v1019, %v1035
        %v1042 = vadd.f32 %v1020, %v1038
        %v1043 = vlaneseq
        %v1044 = vshrl.u32 %v1043, 7
        %v1045 = vsub.s32 7, %v1044
        %v1046 = vrot.slane %v460, %v1045
        %v1047 = vmul.f32 %v451, %v1046
        %v1048 = vmul.f32 %v452, %v1046
        %v1049 = vmul.f32 %v453, %v1046
        %v1050 = vmul.f32 %v454, %v1046
        %v1055 = vrot.slane %v1047, 5
        %v1056 = vrot.slane %v1048, 5
        %v1057 = vsel %vm922, %v1055, %v1056
        %v1058 = vrot.slane %v1049, 5
        %v1059 = vrot.slane %v1050, 5
        %v1060 = vsel %vm922, %v1058, %v1059
        %v1063 = vadd.f32 %v1041, %v1057
        %v1064 = vadd.f32 %v1042, %v1060
        %v1065 = vlaneseq
        %v1066 = vshrl.u32 %v1065, 7
        %v1067 = vsub.s32 6, %v1066
        %v1068 = vrot.slane %v455, %v1067
        %v1069 = vmul.f32 %v439, %v1068
        %v1070 = vmul.f32 %v440, %v1068
        %v1071 = vmul.f32 %v441, %v1068
        %v1072 = vmul.f32 %v442, %v1068
        %vm1077 = vcmask 1041408
        %v1078 = vrot.slane %v1069, 6
        %v1079 = vrot.slane %v1070, 6
        %v1080 = vsel %vm1077, %v1078, %v1079
        %v1081 = vrot.slane %v1071, 6
        %v1082 = vrot.slane %v1072, 6
        %v1083 = vsel %vm1077, %v1081, %v1082
        %v1086 = vadd.f32 %v1063, %v1080
        %v1087 = vadd.f32 %v1064, %v1083
        %v1088 = vlaneseq
        %v1089 = vshrl.u32 %v1088, 7
        %v1090 = vsub.s32 5, %v1089
        %v1091 = vrot.slane %v456, %v1090
        %v1092 = vmul.f32 %v441, %v1091
        %v1093 = vmul.f32 %v442, %v1091
        %v1094 = vmul.f32 %v443, %v1091
        %v1095 = vmul.f32 %v444, %v1091
        %v1100 = vrot.slane %v1092, 6
        %v1101 = vrot.slane %v1093, 6
        %v1102 = vsel %vm1077, %v1100, %v1101
        %v1103 = vrot.slane %v1094, 6
        %v1104 = vrot.slane %v1095, 6
        %v1105 = vsel %vm1077, %v1103, %v1104
        %v1108 = vadd.f32 %v1086, %v1102
        %v1109 = vadd.f32 %v1087, %v1105
        %v1110 = vlaneseq
        %v1111 = vshrl.u32 %v1110, 7
        %v1112 = vsub.s32 4, %v1111
        %v1113 = vrot.slane %v457, %v1112
        %v1114 = vmul.f32 %v443, %v1113
        %v1115 = vmul.f32 %v444, %v1113
        %v1116 = vmul.f32 %v445, %v1113
        %v1117 = vmul.f32 %v446, %v1113
        %v1122 = vrot.slane %v1114, 6
        %v1123 = vrot.slane %v1115, 6
        %v1124 = vsel %vm1077, %v1122, %v1123
        %v1125 = vrot.slane %v1116, 6
        %v1126 = vrot.slane %v1117, 6
        %v1127 = vsel %vm1077, %v1125, %v1126
        %v1130 = vadd.f32 %v1108, %v1124
        %v1131 = vadd.f32 %v1109, %v1127
        %v1132 = vlaneseq
        %v1133 = vshrl.u32 %v1132, 7
        %v1134 = vsub.s32 3, %v1133
        %v1135 = vrot.slane %v458, %v1134
        %v1136 = vmul.f32 %v445, %v1135
        %v1137 = vmul.f32 %v446, %v1135
        %v1138 = vmul.f32 %v447, %v1135
        %v1139 = vmul.f32 %v448, %v1135
        %v1144 = vrot.slane %v1136, 6
        %v1145 = vrot.slane %v1137, 6
        %v1146 = vsel %vm1077, %v1144, %v1145
        %v1147 = vrot.slane %v1138, 6
        %v1148 = vrot.slane %v1139, 6
        %v1149 = vsel %vm1077, %v1147, %v1148
        %v1152 = vadd.f32 %v1130, %v1146
        %v1153 = vadd.f32 %v1131, %v1149
        %v1154 = vlaneseq
        %v1155 = vshrl.u32 %v1154, 7
        %v1156 = vsub.s32 2, %v1155
        %v1157 = vrot.slane %v459, %v1156
        %v1158 = vmul.f32 %v447, %v1157
        %v1159 = vmul.f32 %v448, %v1157
        %v1160 = vmul.f32 %v449, %v1157
        %v1161 = vmul.f32 %v450, %v1157
        %v1166 = vrot.slane %v1158, 6
        %v1167 = vrot.slane %v1159, 6
        %v1168 = vsel %vm1077, %v1166, %v1167
        %v1169 = vrot.slane %v1160, 6
        %v1170 = vrot.slane %v1161, 6
        %v1171 = vsel %vm1077, %v1169, %v1170
        %v1174 = vadd.f32 %v1152, %v1168
        %v1175 = vadd.f32 %v1153, %v1171
        %v1176 = vlaneseq
        %v1177 = vshrl.u32 %v1176, 7
        %v1178 = vsub.s32 1, %v1177
        %v1179 = vrot.slane %v460, %v1178
        %v1180 = vmul.f32 %v449, %v1179
        %v1181 = vmul.f32 %v450, %v1179
        %v1182 = vmul.f32 %v451, %v1179
        %v1183 = vmul.f32 %v452, %v1179
        %v1188 = vrot.slane %v1180, 6
        %v1189 = vrot.slane %v1181, 6
        %v1190 = vsel %vm1077, %v1188, %v1189
        %v1191 = vrot.slane %v1182, 6
        %v1192 = vrot.slane %v1183, 6
        %v1193 = vsel %vm1077, %v1191, %v1192
        %v1196 = vadd.f32 %v1174, %v1190
        %v1197 = vadd.f32 %v1175, %v1193
        %v1198 = vlaneseq
        %v1199 = vshrl.u32 %v1198, 7
        %v1200 = vsub.s32 0, %v1199
        %v1201 = vrot.slane %v461, %v1200
        %v1202 = vmul.f32 %v451, %v1201
        %v1203 = vmul.f32 %v452, %v1201
        %v1204 = vmul.f32 %v453, %v1201
        %v1205 = vmul.f32 %v454, %v1201
        %v1210 = vrot.slane %v1202, 6
        %v1211 = vrot.slane %v1203, 6
        %v1212 = vsel %vm1077, %v1210, %v1211
        %v1213 = vrot.slane %v1204, 6
        %v1214 = vrot.slane %v1205, 6
        %v1215 = vsel %vm1077, %v1213, %v1214
        %v1218 = vadd.f32 %v1196, %v1212
        %v1219 = vadd.f32 %v1197, %v1215
        %v1220 = vld [vmem:[%s3] sm:$0x1]
        %v1222 = vlaneseq
        %v1223 = vshrl.u32 %v1222, 7
        %v1224 = vsub.s32 0, %v1223
        %v1225 = vrot.slane %v1220, %v1224
        %v1227 = vadd.f32 %v1218, %v1225
        %v1228 = vadd.f32 %v1219, %v1225
        %vm1229 = vcmask 257024
        %1230 = vst.msk [vmem:[#allocation2] sm:$0xf] %vm1229, %v1227
        %1231 = vst.msk [vmem:[#allocation2 + $0x4] sm:$0xf] %vm1229, %v1228
        %v1232 = vld [vmem:[#allocation2] sm:$0xff]
        %v1233 = vld [vmem:[%s4] sm:$0x1]
        %v1234 = vld [vmem:[%s5] sm:$0x1]
        %vm1235 = vcmask 261120
        %v1236 = vsel %vm1235, %v1232, 0.0
        %1237 = vadd.xlane.f32.xlu0 %v1236
        %v1238 = vpop.xlane.xlu0 %1237
        %v1239 = vrcp.pop 32.0
        %v1240 = vmul.f32 %v1238, %v1239
        %v1241 = vsub.f32 %v1232, %v1240
        %v1242 = vmul.f32 %v1241, %v1241
        %v1243 = vsel %vm1235, %v1242, 0.0
        %1244 = vadd.xlane.f32.xlu0 %v1243
        %v1245 = vpop.xlane.xlu0 %1244
        %v1246 = vmul.f32 %v1245, %v1239
        %v1247 = vadd.f32 %v1246, 1e-05
        %v1248 = vrsqrt.pop %v1247
        %v1249 = vmul.f32 %v1241, %v1248
        %v1251 = vlaneseq
        %v1252 = vshrl.u32 %v1251, 7
        %v1253 = vsub.s32 0, %v1252
        %v1254 = vrot.slane %v1233, %v1253
        %v1256 = vmul.f32 %v1249, %v1254
        %v1258 = vlaneseq
        %v1259 = vshrl.u32 %v1258, 7
        %v1260 = vsub.s32 0, %v1259
        %v1261 = vrot.slane %v1234, %v1260
        %v1263 = vadd.f32 %v1256, %v1261
        %v1264 = vld [vmem:[%s6] sm:$0xff]
        %v1265 = vld [vmem:[%s6 + $0x8] sm:$0xff]
        %v1266 = vld [vmem:[%s6 + $0x10] sm:$0xff]
        %v1267 = vld [vmem:[%s6 + $0x18] sm:$0xff]
        %v1268 = vld [vmem:[%s7] sm:$0x1]
        %v1270 = vlaneseq
        %v1271 = vshrl.u32 %v1270, 7
        %v1272 = vsub.s32 0, %v1271
        %v1273 = vrot.slane %v1268, %v1272
        %v1276 = vsel %vm1235, %v1263, 0
        %1278 = vmatprep.subr.mxu0 0.0
        %1279 = vmatpush1.msra.mxu0 0.0
        %1280 = vmatprep.subr.mxu0 0.0
        %1281 = vmatpush1.msra.mxu0 0.0
        %1282 = vmatprep.subr.mxu0 0.0
        %1283 = vmatpush1.msra.mxu0 0.0
        %1284 = vmatprep.subr.mxu0 0.0
        %1285 = vmatpush1.msra.mxu0 0.0
        %1286 = vmatprep.subr.mxu0 0.0
        %1287 = vmatpush1.msra.mxu0 0.0
        %1288 = vmatprep.subr.mxu0 0.0
        %1289 = vmatpush1.msra.mxu0 0.0
        %1290 = vmatprep.subr.mxu0 0.0
        %1291 = vmatpush1.msra.mxu0 0.0
        %1292 = vmatprep.subr.mxu0 0.0
        %1293 = vmatpush1.msra.mxu0 0.0
        %1294 = vmatprep.subr.mxu0 0.0
        %1295 = vmatpush1.msra.mxu0 0.0
        %1296 = vmatprep.subr.mxu0 0.0
        %1297 = vmatpush1.msra.mxu0 0.0
        %1298 = vmatprep.subr.mxu0 0.0
        %1299 = vmatpush1.msra.mxu0 0.0
        %1300 = vmatprep.subr.mxu0 0.0
        %1301 = vmatpush1.msra.mxu0 0.0
        %1302 = vmatprep.subr.mxu0 0.0
        %1303 = vmatpush1.msra.mxu0 %v1267
        %1304 = vmatprep.subr.mxu0 0.0
        %1305 = vmatpush1.msra.mxu0 %v1266
        %1306 = vmatprep.subr.mxu0 0.0
        %1307 = vmatpush1.msra.mxu0 %v1265
        %1308 = vmatprep.subr.mxu0 0.0
        %1309 = vmatpush1.msra.mxu0 %v1264
        %1310 = vmatprep.subr.mxu0 0.0
        %1311 = vmatpush2.msra.mxu0 0.0
        %1312 = vmatprep.subr.mxu0 0.0
        %1313 = vmatpush2.msra.mxu0 0.0
        %1314 = vmatprep.subr.mxu0 0.0
        %1315 = vmatpush2.msra.mxu0 0.0
        %1316 = vmatprep.subr.mxu0 0.0
        %1317 = vmatpush2.msra.mxu0 0.0
        %1318 = vmatprep.subr.mxu0 0.0
        %1319 = vmatpush2.msra.mxu0 0.0
        %1320 = vmatprep.subr.mxu0 0.0
        %1321 = vmatpush2.msra.mxu0 0.0
        %1322 = vmatprep.subr.mxu0 0.0
        %1323 = vmatpush2.msra.mxu0 0.0
        %1324 = vmatprep.subr.mxu0 0.0
        %1325 = vmatpush2.msra.mxu0 0.0
        %1326 = vmatprep.subr.mxu0 0.0
        %1327 = vmatpush2.msra.mxu0 0.0
        %1328 = vmatprep.subr.mxu0 0.0
        %1329 = vmatpush2.msra.mxu0 0.0
        %1330 = vmatprep.subr.mxu0 0.0
        %1331 = vmatpush2.msra.mxu0 0.0
        %1332 = vmatprep.subr.mxu0 0.0
        %1333 = vmatpush2.msra.mxu0 0.0
        %1334 = vmatprep.subr.mxu0 0.0
        %1335 = vmatpush2.msra.mxu0 0.0
        %1336 = vmatprep.subr.mxu0 0.0
        %1337 = vmatpush2.msra.mxu0 0.0
        %1338 = vmatprep.subr.mxu0 0.0
        %1339 = vmatpush2.msra.mxu0 0.0
        %1340 = vmatprep.subr.mxu0 0.0
        %1341 = vmatpush2.msra.mxu0 0.0
        %1342 = vmatprep.mubr.f32.mxu0 0.0
        %1343 = vmatmul.mubr.f32.gmra.mxu0 %v1276
        %v1344 = vpop.f32.mrf.mxu0
        %v1345 = vadd.f32 %v1273, %v1344
        %v1346 = vpop.f32.mrf.mxu0
        %1347 = vdwg.mxu0
        %v1348 = vmul.f32 %v1345, 0.5
        %v1349 = vmul.f32 %v1345, 0.70710677
        %v1350 = verf.f32.pop %v1349
        %v1351 = vadd.f32 %v1350, 1.0
        %v1352 = vmul.f32 %v1348, %v1351
        %v1353 = vld [vmem:[%s8] sm:$0xff]
        %v1354 = vld [vmem:[%s8 + $0x8] sm:$0xff]
        %v1355 = vld [vmem:[%s8 + $0x10] sm:$0xff]
        %v1356 = vld [vmem:[%s8 + $0x18] sm:$0xff]
        %v1357 = vld [vmem:[%s8 + $0x20] sm:$0xff]
        %v1358 = vld [vmem:[%s8 + $0x28] sm:$0xff]
        %v1359 = vld [vmem:[%s8 + $0x30] sm:$0xff]
        %v1360 = vld [vmem:[%s8 + $0x38] sm:$0xff]
        %v1361 = vld [vmem:[%s8 + $0x40] sm:$0xff]
        %v1362 = vld [vmem:[%s8 + $0x48] sm:$0xff]
        %v1363 = vld [vmem:[%s8 + $0x50] sm:$0xff]
        %v1364 = vld [vmem:[%s8 + $0x58] sm:$0xff]
        %v1365 = vld [vmem:[%s8 + $0x60] sm:$0xff]
        %v1366 = vld [vmem:[%s8 + $0x68] sm:$0xff]
        %v1367 = vld [vmem:[%s8 + $0x70] sm:$0xff]
        %v1368 = vld [vmem:[%s8 + $0x78] sm:$0xff]
        %v1369 = vld [vmem:[%s9] sm:$0x1]
        %v1371 = vlaneseq
        %v1372 = vshrl.u32 %v1371, 7
        %v1373 = vsub.s32 0, %v1372
        %v1374 = vrot.slane %v1369, %v1373
        %1376 = vmatprep.subr.mxu0 0.0
        %1377 = vmatpush1.msra.mxu0 %v1368
        %1378 = vmatprep.subr.mxu0 0.0
        %1379 = vmatpush1.msra.mxu0 %v1367
        %1380 = vmatprep.subr.mxu0 0.0
        %1381 = vmatpush1.msra.mxu0 %v1366
        %1382 = vmatprep.subr.mxu0 0.0
        %1383 = vmatpush1.msra.mxu0 %v1365
        %1384 = vmatprep.subr.mxu0 0.0
        %1385 = vmatpush1.msra.mxu0 %v1364
        %1386 = vmatprep.subr.mxu0 0.0
        %1387 = vmatpush1.msra.mxu0 %v1363
        %1388 = vmatprep.subr.mxu0 0.0
        %1389 = vmatpush1.msra.mxu0 %v1362
        %1390 = vmatprep.subr.mxu0 0.0
        %1391 = vmatpush1.msra.mxu0 %v1361
        %1392 = vmatprep.subr.mxu0 0.0
        %1393 = vmatpush1.msra.mxu0 %v1360
        %1394 = vmatprep.subr.mxu0 0.0
        %1395 = vmatpush1.msra.mxu0 %v1359
        %1396 = vmatprep.subr.mxu0 0.0
        %1397 = vmatpush1.msra.mxu0 %v1358
        %1398 = vmatprep.subr.mxu0 0.0
        %1399 = vmatpush1.msra.mxu0 %v1357
        %1400 = vmatprep.subr.mxu0 0.0
        %1401 = vmatpush1.msra.mxu0 %v1356
        %1402 = vmatprep.subr.mxu0 0.0
        %1403 = vmatpush1.msra.mxu0 %v1355
        %1404 = vmatprep.subr.mxu0 0.0
        %1405 = vmatpush1.msra.mxu0 %v1354
        %1406 = vmatprep.subr.mxu0 0.0
        %1407 = vmatpush1.msra.mxu0 %v1353
        %1408 = vmatprep.subr.mxu0 0.0
        %1409 = vmatpush2.msra.mxu0 0.0
        %1410 = vmatprep.subr.mxu0 0.0
        %1411 = vmatpush2.msra.mxu0 0.0
        %1412 = vmatprep.subr.mxu0 0.0
        %1413 = vmatpush2.msra.mxu0 0.0
        %1414 = vmatprep.subr.mxu0 0.0
        %1415 = vmatpush2.msra.mxu0 0.0
        %1416 = vmatprep.subr.mxu0 0.0
        %1417 = vmatpush2.msra.mxu0 0.0
        %1418 = vmatprep.subr.mxu0 0.0
        %1419 = vmatpush2.msra.mxu0 0.0
        %1420 = vmatprep.subr.mxu0 0.0
        %1421 = vmatpush2.msra.mxu0 0.0
        %1422 = vmatprep.subr.mxu0 0.0
        %1423 = vmatpush2.msra.mxu0 0.0
        %1424 = vmatprep.subr.mxu0 0.0
        %1425 = vmatpush2.msra.mxu0 0.0
        %1426 = vmatprep.subr.mxu0 0.0
        %1427 = vmatpush2.msra.mxu0 0.0
        %1428 = vmatprep.subr.mxu0 0.0
        %1429 = vmatpush2.msra.mxu0 0.0
        %1430 = vmatprep.subr.mxu0 0.0
        %1431 = vmatpush2.msra.mxu0 0.0
        %1432 = vmatprep.subr.mxu0 0.0
        %1433 = vmatpush2.msra.mxu0 0.0
        %1434 = vmatprep.subr.mxu0 0.0
        %1435 = vmatpush2.msra.mxu0 0.0
        %1436 = vmatprep.subr.mxu0 0.0
        %1437 = vmatpush2.msra.mxu0 0.0
        %1438 = vmatprep.subr.mxu0 0.0
        %1439 = vmatpush2.msra.mxu0 0.0
        %1440 = vmatprep.mubr.f32.mxu0 0.0
        %1441 = vmatmul.mubr.f32.gmra.mxu0 %v1352
        %v1442 = vpop.f32.mrf.mxu0
        %v1443 = vadd.f32 %v1374, %v1442
        %v1444 = vpop.f32.mrf.mxu0
        %1445 = vdwg.mxu0
        %v1446 = vld [vmem:[%s10] sm:$0x1]
        %v1447 = vld [vmem:[%s433] sm:$0xf]
        %v1449 = vlaneseq
        %v1450 = vshrl.u32 %v1449, 7
        %v1451 = vsub.s32 0, %v1450
        %v1452 = vrot.slane %v1446, %v1451
        %v1454 = vmul.f32 %v1452, %v1443
        %v1455 = vadd.f32 %v1447, %v1454
        %1456 = vst.msk [vmem:[%s419] sm:$0xf] %vm1229, %v1455
        %s1457 = scalar_lea.vmem %s433, 4
        %v1458 = vld [vmem:[%s1457] sm:$0xf]
        %v1460 = vrot.slane %v1454, 4
        %v1462 = vadd.f32 %v1458, %v1460
        %s1463 = scalar_lea.vmem %s419, 4 [#allocation3]
        %1464 = vst.msk [vmem:[%s1463] sm:$0xf] %vm1229, %v1462
        %s1465 = sand.u32 %s290, 1
        %s1466 = scalar_lea.sflag [#allocation4], %s1465
        %s1467 = sand.u32 %s290, 1
        %s1468 = smul.addr %s1467, 8
        %s1469 = scalar_lea.vmem [#allocation3], %s1468
        // Predicated region
        $region65: #{tpu_custom_call.1} parent=63 // pred_check
          %p1470 = pneg %p300
        $region66: #{tpu_custom_call.1} parent=63 // pred_check_branch
          %1472 = sbr.rel (%p1470) target = $region68
        $region67: #{tpu_custom_call.1} parent=63 // pred_region
          %s1473 = smul.u32 2, %s30
          %s1475 = ssub.s32 128, 128
          %1476 = vsyncadd %s1466, %s1475
          %s1477 = smul.addr %s29, 8
          %s1478 = sadd.s32 %s1473, %s1477
          %s1479 = smul.addr %s1478, 64
          %s1480 = scalar_lea.hbm %s11, %s1479
          %s1481 = sshll.u32 %s1469, 4
          %s1482 = int_to_ptr.vmem [resolvable:$true] %s1481
          %1487 = dma.vmem_to_hbm [thread:$0]  %s1482, 128, %s1480, %s1466, 64, 64, 4
        $region68: #{tpu_custom_call.1} parent=63 // pred_fallthru
          _
      $region64: #{tpu_custom_call.1} parent=5 // pred_fallthru
        _
      %p1488 = scmp.le.s32.totalorder 2, %s20
      // Predicated region
      $region69: #{tpu_custom_call.1} parent=5 // pred_check
        %p1489 = pneg %p1488
      $region70: #{tpu_custom_call.1} parent=5 // pred_check_branch
        %1491 = sbr.rel (%p1489) target = $region72
      $region71: #{tpu_custom_call.1} parent=5 // pred_region
        %s1492 = ssub.s32 %s20, 2
        // Predicated region
        $region73: #{tpu_custom_call.1} parent=71 // pred_check
          %p1493 = pneg %p306
        $region74: #{tpu_custom_call.1} parent=71 // pred_check_branch
          %1495 = sbr.rel (%p1493) target = $region76
        $region75: #{tpu_custom_call.1} parent=71 // pred_region
          %s1496 = sand.u32 %s291, 1
          %s1497 = scalar_lea.sflag [#allocation4], %s1496
          %s1498 = sand.u32 %s291, 1
          %s1499 = smul.addr %s1498, 8
          %s1500 = scalar_lea.vmem [#allocation3], %s1499
          %1501 = dma.done %s1497, 128
        $region76: #{tpu_custom_call.1} parent=71 // pred_fallthru
          _
      $region72: #{tpu_custom_call.1} parent=5 // pred_fallthru
        _
    $region6: #{tpu_custom_call.1} parent=1 // loop_footer
      %s24 = sadd.s32 1, %s20
    $region7: #{tpu_custom_call.1} parent=1 // loop_footer_branch
      %19 = sbr.rel target = $region3
    $region8: #{tpu_custom_call.1} parent=1 // loop_exit
      _
    %1502 = vsyncpa [#allocation4], 1
    %s1503 = scalar_lea.sflag [#allocation4], 1
    %1504 = vsyncpa %s1503, 1

</llo_original>
